<compile_context>
chip_gen: v6e
topology: v6e:2x2x1
jax: 0.10.0
libtpu: 0.0.40
codegen_flags: <defaults>
</compile_context>

<pallas_src>
import functools

import jax
import jax.numpy as jnp
from jax.experimental import pallas as pl
from jax.experimental.pallas import tpu as pltpu

_LN_EPS = 1e-5  # PyTorch LayerNorm default eps


# ---------------------------------------------------------------------------
# Fused kernel: num_layers LSTM layers -> LayerNorm -> Linear(H,1) -> sigmoid
# refs layout:
#   [x, (w_ih_t, w_hh_t, bias) * L, gamma, beta, w_fc, b_fc,   # inputs
#    out, hidden]                                               # outputs
# ---------------------------------------------------------------------------
def _rnn_classifier_kernel(num_layers, *refs):
    n_w = 3 * num_layers
    x_ref = refs[0]
    layer_refs = [refs[1 + 3 * l: 4 + 3 * l] for l in range(num_layers)]
    gamma_ref, beta_ref, wfc_ref, bfc_ref = refs[1 + n_w: 5 + n_w]
    out_ref, hidden_ref = refs[5 + n_w: 7 + n_w]

    B, T, _ = x_ref.shape
    H = hidden_ref.shape[-1]
    f32 = jnp.float32

    # Layer-0 input rearranged time-major ONCE, off the serial critical path.
    xv = x_ref[...].astype(f32)                                        # (B, T, D)
    seq_tm = jnp.concatenate([xv[:, t, :] for t in range(T)], axis=0)  # (T*B, D)

    hs = None
    for layer, (wih_ref, whh_ref, b_ref) in enumerate(layer_refs):
        if layer > 0:
            # Previous layer's hidden states, already time-major.
            seq_tm = jnp.concatenate(hs, axis=0)                       # (T*B, H)

        # ---- hoisted, flattened input projection: ONE matmul per layer -----
        wih = wih_ref[...]                                             # (D_in, 4H)
        bias = b_ref[...]                                              # (1, 4H)
        pre = jnp.dot(seq_tm, wih, preferred_element_type=f32) + bias  # (T*B, 4H)

        # ---- serial recurrence over time (fully unrolled, T is small) ------
        # h, c and the output sequence stay in registers; the only per-step
        # memory-ish work is a contiguous 2-sublane slice of `pre`.
        # NOTE: h @ whh is kept f32 (MXU multi-pass) for fidelity to the f32
        # PyTorch module; casting h/whh to bf16 cuts MXU passes ~3x if the
        # accuracy budget allows.
        whh = whh_ref[...]                                             # (H, 4H)
        h = jnp.zeros((B, H), f32)
        c = jnp.zeros((B, H), f32)
        hs = []
        for t in range(T):
            gates = pre[t * B:(t + 1) * B, :] + jnp.dot(
                h, whh, preferred_element_type=f32)                    # (B, 4H)
            sig = jax.nn.sigmoid(gates)          # 1 EUP pass over the full 4H slab
            tnh = jnp.tanh(gates)                # 1 EUP pass over the full 4H slab
            i_g = sig[:, 0 * H:1 * H]
            f_g = sig[:, 1 * H:2 * H]
            g_g = tnh[:, 2 * H:3 * H]
            o_g = sig[:, 3 * H:4 * H]
            c = f_g * c + i_g * g_g
            h = o_g * jnp.tanh(c)
            hs.append(h)
        # TODO(synk): nn.LSTM inter-layer dropout (p=0.5) applies only in
        # training mode; this kernel implements the eval/inference path.

    # ---- epilogue: LayerNorm over H + Linear(H -> 1) + sigmoid, whole slab --
    seq_bm = jnp.stack(hs, axis=1)                                     # (B, T, H)
    gamma = gamma_ref[...].reshape(1, 1, H)
    beta = beta_ref[...].reshape(1, 1, H)
    mean = jnp.mean(seq_bm, axis=-1, keepdims=True)
    xc = seq_bm - mean
    var = jnp.mean(xc * xc, axis=-1, keepdims=True)
    ln = xc * jax.lax.rsqrt(var + _LN_EPS) * gamma + beta              # (B, T, H)
    hidden_ref[...] = ln.astype(hidden_ref.dtype)                      # one bulk store

    # FC as VPU multiply + lane reduction (avoids a 1-column MXU matmul);
    # out is emitted lane-dense as (B, T) and reshaped in the wrapper.
    w_fc = wfc_ref[...].reshape(1, 1, H)
    logit = jnp.sum(ln * w_fc, axis=-1) + bfc_ref[...]                 # (B, T)
    out_ref[...] = jax.nn.sigmoid(logit).astype(out_ref.dtype)


# ---------------------------------------------------------------------------
# Wrapper: single grid-less pallas_call for the whole forward.
# ---------------------------------------------------------------------------
@jax.jit
def rnn_classifier_forward(x, params):
    B, T, _ = x.shape
    H = params["gamma"].shape[-1]
    layers = params["layers"]
    num_layers = len(layers)

    weights = []
    for lp in layers:
        weights += [lp["w_ih_t"], lp["w_hh_t"], lp["bias"]]

    inputs = (x, *weights, params["gamma"], params["beta"],
              params["w_fc"], params["b_fc"])
    vmem_spec = pl.BlockSpec(memory_space=pltpu.MemorySpace.VMEM)

    kernel = functools.partial(_rnn_classifier_kernel, num_layers)
    # VMEM scaling note: the largest live intermediate is the (T*B, 4H) f32
    # pre-activation slab (grows linearly with B*T).  At these shapes it is a
    # few KB on every generation; if B/T scale up (esp. on v7x, 64 MiB VMEM),
    # switch it to bf16 or tile T with pltpu.emit_pipeline.
    out_bt, hidden = pl.pallas_call(
        kernel,
        out_shape=(
            jax.ShapeDtypeStruct((B, T), jnp.float32),    # sigmoid(fc(ln(h)))
            jax.ShapeDtypeStruct((B, T, H), jnp.float32),  # LayerNorm'd hidden
        ),
        in_specs=[vmem_spec] * len(inputs),
        out_specs=(vmem_spec, vmem_spec),
    )(*inputs)
    # Free layout plumbing: restore the module's (B, T, 1) output shape.
    return out_bt.reshape(B, T, 1), hidden


# ---------------------------------------------------------------------------
# Parameter init (deterministic, PyTorch-style uniform(-1/sqrt(H), 1/sqrt(H)))
# ---------------------------------------------------------------------------
def init_params(key, input_size, hidden_size, num_layers):
    H = hidden_size
    bound = 1.0 / float(H) ** 0.5
    params = {"layers": []}
    for layer in range(num_layers):
        d_in = input_size if layer == 0 else H
        key, k1, k2, k3, k4 = jax.random.split(key, 5)
        w_ih = jax.random.uniform(k1, (4 * H, d_in), jnp.float32, -bound, bound)
        w_hh = jax.random.uniform(k2, (4 * H, H), jnp.float32, -bound, bound)
        b_ih = jax.random.uniform(k3, (4 * H,), jnp.float32, -bound, bound)
        b_hh = jax.random.uniform(k4, (4 * H,), jnp.float32, -bound, bound)
        params["layers"].append({
            "w_ih_t": jnp.transpose(w_ih),              # (d_in, 4H)
            "w_hh_t": jnp.transpose(w_hh),              # (H, 4H)
            "bias": (b_ih + b_hh).reshape(1, 4 * H),    # (1, 4H)
        })
    # LayerNorm default init: gamma=1, beta=0
    params["gamma"] = jnp.ones((1, H), jnp.float32)
    params["beta"] = jnp.zeros((1, H), jnp.float32)
    # fc: Linear(H, 1) -> weight (1, H), bias (1, 1)
    key, k5, k6 = jax.random.split(key, 3)
    params["w_fc"] = jax.random.uniform(k5, (1, H), jnp.float32, -bound, bound)
    params["b_fc"] = jax.random.uniform(k6, (1, 1), jnp.float32, -bound, bound)
    return params


# ---------------------------------------------------------------------------
# Pure-JAX reference (same math) for a correctness check.
# ---------------------------------------------------------------------------
def _forward_reference(x, params):
    B, T, _ = x.shape
    H = params["gamma"].shape[-1]
    seq = x
    for lp in params["layers"]:
        wih, whh, bias = lp["w_ih_t"], lp["w_hh_t"], lp["bias"]
        h = jnp.zeros((B, H), jnp.float32)
        c = jnp.zeros((B, H), jnp.float32)
        hs = []
        for t in range(T):
            gates = seq[:, t, :] @ wih + h @ whh + bias
            i = jax.nn.sigmoid(gates[:, 0 * H:1 * H])
            f = jax.nn.sigmoid(gates[:, 1 * H:2 * H])
            g = jnp.tanh(gates[:, 2 * H:3 * H])
            o = jax.nn.sigmoid(gates[:, 3 * H:4 * H])
            c = f * c + i * g
            h = o * jnp.tanh(c)
            hs.append(h)
        seq = jnp.stack(hs, axis=1)                      # (B, T, H)
    mean = jnp.mean(seq, axis=-1, keepdims=True)
    var = jnp.mean((seq - mean) ** 2, axis=-1, keepdims=True)
    ln = (seq - mean) * jax.lax.rsqrt(var + _LN_EPS) * params["gamma"] + params["beta"]
    logit = jnp.sum(ln * params["w_fc"], axis=-1, keepdims=True) + params["b_fc"][0, 0]
    return jax.nn.sigmoid(logit), ln


if __name__ == "__main__":
    # Small shapes implied by the module: batch=2, seq=8, input_size=16,
    # hidden_size=32, num_layers=2.
    B, T, D, H, L = 2, 8, 16, 32, 2

    key = jax.random.PRNGKey(0)
    key, kx, kp = jax.random.split(key, 3)
    x = jax.random.normal(kx, (B, T, D), jnp.float32)
    params = init_params(kp, D, H, L)

    out, hidden = rnn_classifier_forward(x, params)
    jax.block_until_ready((out, hidden))

    assert out.shape == (B, T, 1), out.shape
    assert hidden.shape == (B, T, H), hidden.shape
    assert bool(jnp.all(jnp.isfinite(out))) and bool(jnp.all(jnp.isfinite(hidden)))
    assert bool(jnp.all((out >= 0.0) & (out <= 1.0)))      # sigmoid range

    out_ref, hid_ref = _forward_reference(x, params)
    assert bool(jnp.allclose(out, out_ref, atol=2e-3, rtol=2e-3))
    assert bool(jnp.allclose(hidden, hid_ref, atol=2e-3, rtol=2e-3))

    print("KERNEL_OK")
</pallas_src>

<mosaic_0001>
module attributes {stable_mosaic.version = 11 : i64} {
  func.func @_rnn_classifier_kernel(%arg0: memref<2x8x16xf32, #tpu.memory_space<vmem>>, %arg1: memref<16x128xf32, #tpu.memory_space<vmem>>, %arg2: memref<32x128xf32, #tpu.memory_space<vmem>>, %arg3: memref<1x128xf32, #tpu.memory_space<vmem>>, %arg4: memref<32x128xf32, #tpu.memory_space<vmem>>, %arg5: memref<32x128xf32, #tpu.memory_space<vmem>>, %arg6: memref<1x128xf32, #tpu.memory_space<vmem>>, %arg7: memref<1x32xf32, #tpu.memory_space<vmem>>, %arg8: memref<1x32xf32, #tpu.memory_space<vmem>>, %arg9: memref<1x32xf32, #tpu.memory_space<vmem>>, %arg10: memref<1x1xf32, #tpu.memory_space<vmem>>, %arg11: memref<2x8xf32, #tpu.memory_space<vmem>>, %arg12: memref<2x8x32xf32, #tpu.memory_space<vmem>>) attributes {dimension_semantics = [], scalar_prefetch = 0 : i64, scratch_operands = 0 : i64, tpu.core_type = #tpu.core_type<tc>} {
    %c0 = arith.constant 0 : index
    %c0_0 = arith.constant 0 : index
    %c0_1 = arith.constant 0 : index
    %0 = vector.load %arg0[%c0, %c0_0, %c0_1] : memref<2x8x16xf32, #tpu.memory_space<vmem>>, vector<2x8x16xf32>
    %1 = vector.extract_strided_slice %0 {offsets = [0, 0, 0], sizes = [2, 1, 16], strides = [1, 1, 1]} : vector<2x8x16xf32> to vector<2x1x16xf32>
    %2 = vector.shape_cast %1 : vector<2x1x16xf32> to vector<2x16xf32>
    %3 = vector.extract_strided_slice %0 {offsets = [0, 1, 0], sizes = [2, 1, 16], strides = [1, 1, 1]} : vector<2x8x16xf32> to vector<2x1x16xf32>
    %4 = vector.shape_cast %3 : vector<2x1x16xf32> to vector<2x16xf32>
    %5 = vector.extract_strided_slice %0 {offsets = [0, 2, 0], sizes = [2, 1, 16], strides = [1, 1, 1]} : vector<2x8x16xf32> to vector<2x1x16xf32>
    %6 = vector.shape_cast %5 : vector<2x1x16xf32> to vector<2x16xf32>
    %7 = vector.extract_strided_slice %0 {offsets = [0, 3, 0], sizes = [2, 1, 16], strides = [1, 1, 1]} : vector<2x8x16xf32> to vector<2x1x16xf32>
    %8 = vector.shape_cast %7 : vector<2x1x16xf32> to vector<2x16xf32>
    %9 = vector.extract_strided_slice %0 {offsets = [0, 4, 0], sizes = [2, 1, 16], strides = [1, 1, 1]} : vector<2x8x16xf32> to vector<2x1x16xf32>
    %10 = vector.shape_cast %9 : vector<2x1x16xf32> to vector<2x16xf32>
    %11 = vector.extract_strided_slice %0 {offsets = [0, 5, 0], sizes = [2, 1, 16], strides = [1, 1, 1]} : vector<2x8x16xf32> to vector<2x1x16xf32>
    %12 = vector.shape_cast %11 : vector<2x1x16xf32> to vector<2x16xf32>
    %13 = vector.extract_strided_slice %0 {offsets = [0, 6, 0], sizes = [2, 1, 16], strides = [1, 1, 1]} : vector<2x8x16xf32> to vector<2x1x16xf32>
    %14 = vector.shape_cast %13 : vector<2x1x16xf32> to vector<2x16xf32>
    %15 = vector.extract_strided_slice %0 {offsets = [0, 7, 0], sizes = [2, 1, 16], strides = [1, 1, 1]} : vector<2x8x16xf32> to vector<2x1x16xf32>
    %16 = vector.shape_cast %15 : vector<2x1x16xf32> to vector<2x16xf32>
    %17 = tpu.concatenate %2, %4, %6, %8, %10, %12, %14, %16 in 0 : vector<2x16xf32>, vector<2x16xf32>, vector<2x16xf32>, vector<2x16xf32>, vector<2x16xf32>, vector<2x16xf32>, vector<2x16xf32>, vector<2x16xf32> -> vector<16x16xf32>
    %c0_2 = arith.constant 0 : index
    %c0_3 = arith.constant 0 : index
    %18 = vector.load %arg1[%c0_2, %c0_3] : memref<16x128xf32, #tpu.memory_space<vmem>>, vector<16x128xf32>
    %c0_4 = arith.constant 0 : index
    %c0_5 = arith.constant 0 : index
    %19 = vector.load %arg3[%c0_4, %c0_5] : memref<1x128xf32, #tpu.memory_space<vmem>>, vector<1x128xf32>
    %cst = arith.constant dense<0.000000e+00> : vector<16x128xf32>
    %20 = tpu.matmul %17, %18, %cst {dimension_numbers = #tpu.dot_dimension_numbers<[1], [0], [0], [1], [0, 0, 1, 1], [], []>} : vector<16x16xf32>, vector<16x128xf32>, vector<16x128xf32> -> vector<16x128xf32>
    %21 = vector.broadcast %19 : vector<1x128xf32> to vector<16x128xf32>
    %22 = arith.addf %20, %21 : vector<16x128xf32>
    %c0_6 = arith.constant 0 : index
    %c0_7 = arith.constant 0 : index
    %23 = vector.load %arg2[%c0_6, %c0_7] : memref<32x128xf32, #tpu.memory_space<vmem>>, vector<32x128xf32>
    %cst_8 = arith.constant 0.000000e+00 : f32
    %24 = vector.broadcast %cst_8 : f32 to vector<2x32xf32>
    %cst_9 = arith.constant 0.000000e+00 : f32
    %25 = vector.broadcast %cst_9 : f32 to vector<2x32xf32>
    %26 = vector.extract_strided_slice %22 {offsets = [0, 0], sizes = [2, 128], strides = [1, 1]} : vector<16x128xf32> to vector<2x128xf32>
    %cst_10 = arith.constant dense<0.000000e+00> : vector<2x128xf32>
    %27 = tpu.matmul %24, %23, %cst_10 {dimension_numbers = #tpu.dot_dimension_numbers<[1], [0], [0], [1], [0, 0, 1, 1], [], []>} : vector<2x32xf32>, vector<32x128xf32>, vector<2x128xf32> -> vector<2x128xf32>
    %28 = arith.addf %26, %27 : vector<2x128xf32>
    %29 = arith.negf %28 : vector<2x128xf32>
    %30 = math.exp %29 : vector<2x128xf32>
    %cst_11 = arith.constant 1.000000e+00 : f32
    %31 = vector.broadcast %cst_11 : f32 to vector<2x128xf32>
    %32 = arith.addf %31, %30 : vector<2x128xf32>
    %33 = arith.divf %31, %32 : vector<2x128xf32>
    %34 = math.tanh %28 : vector<2x128xf32>
    %35 = vector.extract_strided_slice %33 {offsets = [0, 0], sizes = [2, 32], strides = [1, 1]} : vector<2x128xf32> to vector<2x32xf32>
    %36 = vector.extract_strided_slice %33 {offsets = [0, 32], sizes = [2, 32], strides = [1, 1]} : vector<2x128xf32> to vector<2x32xf32>
    %37 = vector.extract_strided_slice %34 {offsets = [0, 64], sizes = [2, 32], strides = [1, 1]} : vector<2x128xf32> to vector<2x32xf32>
    %38 = vector.extract_strided_slice %33 {offsets = [0, 96], sizes = [2, 32], strides = [1, 1]} : vector<2x128xf32> to vector<2x32xf32>
    %39 = arith.mulf %36, %25 : vector<2x32xf32>
    %40 = arith.mulf %35, %37 : vector<2x32xf32>
    %41 = arith.addf %39, %40 : vector<2x32xf32>
    %42 = math.tanh %41 : vector<2x32xf32>
    %43 = arith.mulf %38, %42 : vector<2x32xf32>
    %44 = vector.extract_strided_slice %22 {offsets = [2, 0], sizes = [2, 128], strides = [1, 1]} : vector<16x128xf32> to vector<2x128xf32>
    %cst_12 = arith.constant dense<0.000000e+00> : vector<2x128xf32>
    %45 = tpu.matmul %43, %23, %cst_12 {dimension_numbers = #tpu.dot_dimension_numbers<[1], [0], [0], [1], [0, 0, 1, 1], [], []>} : vector<2x32xf32>, vector<32x128xf32>, vector<2x128xf32> -> vector<2x128xf32>
    %46 = arith.addf %44, %45 : vector<2x128xf32>
    %47 = arith.negf %46 : vector<2x128xf32>
    %48 = math.exp %47 : vector<2x128xf32>
    %cst_13 = arith.constant 1.000000e+00 : f32
    %49 = vector.broadcast %cst_13 : f32 to vector<2x128xf32>
    %50 = arith.addf %49, %48 : vector<2x128xf32>
    %51 = arith.divf %49, %50 : vector<2x128xf32>
    %52 = math.tanh %46 : vector<2x128xf32>
    %53 = vector.extract_strided_slice %51 {offsets = [0, 0], sizes = [2, 32], strides = [1, 1]} : vector<2x128xf32> to vector<2x32xf32>
    %54 = vector.extract_strided_slice %51 {offsets = [0, 32], sizes = [2, 32], strides = [1, 1]} : vector<2x128xf32> to vector<2x32xf32>
    %55 = vector.extract_strided_slice %52 {offsets = [0, 64], sizes = [2, 32], strides = [1, 1]} : vector<2x128xf32> to vector<2x32xf32>
    %56 = vector.extract_strided_slice %51 {offsets = [0, 96], sizes = [2, 32], strides = [1, 1]} : vector<2x128xf32> to vector<2x32xf32>
    %57 = arith.mulf %54, %41 : vector<2x32xf32>
    %58 = arith.mulf %53, %55 : vector<2x32xf32>
    %59 = arith.addf %57, %58 : vector<2x32xf32>
    %60 = math.tanh %59 : vector<2x32xf32>
    %61 = arith.mulf %56, %60 : vector<2x32xf32>
    %62 = vector.extract_strided_slice %22 {offsets = [4, 0], sizes = [2, 128], strides = [1, 1]} : vector<16x128xf32> to vector<2x128xf32>
    %cst_14 = arith.constant dense<0.000000e+00> : vector<2x128xf32>
    %63 = tpu.matmul %61, %23, %cst_14 {dimension_numbers = #tpu.dot_dimension_numbers<[1], [0], [0], [1], [0, 0, 1, 1], [], []>} : vector<2x32xf32>, vector<32x128xf32>, vector<2x128xf32> -> vector<2x128xf32>
    %64 = arith.addf %62, %63 : vector<2x128xf32>
    %65 = arith.negf %64 : vector<2x128xf32>
    %66 = math.exp %65 : vector<2x128xf32>
    %cst_15 = arith.constant 1.000000e+00 : f32
    %67 = vector.broadcast %cst_15 : f32 to vector<2x128xf32>
    %68 = arith.addf %67, %66 : vector<2x128xf32>
    %69 = arith.divf %67, %68 : vector<2x128xf32>
    %70 = math.tanh %64 : vector<2x128xf32>
    %71 = vector.extract_strided_slice %69 {offsets = [0, 0], sizes = [2, 32], strides = [1, 1]} : vector<2x128xf32> to vector<2x32xf32>
    %72 = vector.extract_strided_slice %69 {offsets = [0, 32], sizes = [2, 32], strides = [1, 1]} : vector<2x128xf32> to vector<2x32xf32>
    %73 = vector.extract_strided_slice %70 {offsets = [0, 64], sizes = [2, 32], strides = [1, 1]} : vector<2x128xf32> to vector<2x32xf32>
    %74 = vector.extract_strided_slice %69 {offsets = [0, 96], sizes = [2, 32], strides = [1, 1]} : vector<2x128xf32> to vector<2x32xf32>
    %75 = arith.mulf %72, %59 : vector<2x32xf32>
    %76 = arith.mulf %71, %73 : vector<2x32xf32>
    %77 = arith.addf %75, %76 : vector<2x32xf32>
    %78 = math.tanh %77 : vector<2x32xf32>
    %79 = arith.mulf %74, %78 : vector<2x32xf32>
    %80 = vector.extract_strided_slice %22 {offsets = [6, 0], sizes = [2, 128], strides = [1, 1]} : vector<16x128xf32> to vector<2x128xf32>
    %cst_16 = arith.constant dense<0.000000e+00> : vector<2x128xf32>
    %81 = tpu.matmul %79, %23, %cst_16 {dimension_numbers = #tpu.dot_dimension_numbers<[1], [0], [0], [1], [0, 0, 1, 1], [], []>} : vector<2x32xf32>, vector<32x128xf32>, vector<2x128xf32> -> vector<2x128xf32>
    %82 = arith.addf %80, %81 : vector<2x128xf32>
    %83 = arith.negf %82 : vector<2x128xf32>
    %84 = math.exp %83 : vector<2x128xf32>
    %cst_17 = arith.constant 1.000000e+00 : f32
    %85 = vector.broadcast %cst_17 : f32 to vector<2x128xf32>
    %86 = arith.addf %85, %84 : vector<2x128xf32>
    %87 = arith.divf %85, %86 : vector<2x128xf32>
    %88 = math.tanh %82 : vector<2x128xf32>
    %89 = vector.extract_strided_slice %87 {offsets = [0, 0], sizes = [2, 32], strides = [1, 1]} : vector<2x128xf32> to vector<2x32xf32>
    %90 = vector.extract_strided_slice %87 {offsets = [0, 32], sizes = [2, 32], strides = [1, 1]} : vector<2x128xf32> to vector<2x32xf32>
    %91 = vector.extract_strided_slice %88 {offsets = [0, 64], sizes = [2, 32], strides = [1, 1]} : vector<2x128xf32> to vector<2x32xf32>
    %92 = vector.extract_strided_slice %87 {offsets = [0, 96], sizes = [2, 32], strides = [1, 1]} : vector<2x128xf32> to vector<2x32xf32>
    %93 = arith.mulf %90, %77 : vector<2x32xf32>
    %94 = arith.mulf %89, %91 : vector<2x32xf32>
    %95 = arith.addf %93, %94 : vector<2x32xf32>
    %96 = math.tanh %95 : vector<2x32xf32>
    %97 = arith.mulf %92, %96 : vector<2x32xf32>
    %98 = vector.extract_strided_slice %22 {offsets = [8, 0], sizes = [2, 128], strides = [1, 1]} : vector<16x128xf32> to vector<2x128xf32>
    %cst_18 = arith.constant dense<0.000000e+00> : vector<2x128xf32>
    %99 = tpu.matmul %97, %23, %cst_18 {dimension_numbers = #tpu.dot_dimension_numbers<[1], [0], [0], [1], [0, 0, 1, 1], [], []>} : vector<2x32xf32>, vector<32x128xf32>, vector<2x128xf32> -> vector<2x128xf32>
    %100 = arith.addf %98, %99 : vector<2x128xf32>
    %101 = arith.negf %100 : vector<2x128xf32>
    %102 = math.exp %101 : vector<2x128xf32>
    %cst_19 = arith.constant 1.000000e+00 : f32
    %103 = vector.broadcast %cst_19 : f32 to vector<2x128xf32>
    %104 = arith.addf %103, %102 : vector<2x128xf32>
    %105 = arith.divf %103, %104 : vector<2x128xf32>
    %106 = math.tanh %100 : vector<2x128xf32>
    %107 = vector.extract_strided_slice %105 {offsets = [0, 0], sizes = [2, 32], strides = [1, 1]} : vector<2x128xf32> to vector<2x32xf32>
    %108 = vector.extract_strided_slice %105 {offsets = [0, 32], sizes = [2, 32], strides = [1, 1]} : vector<2x128xf32> to vector<2x32xf32>
    %109 = vector.extract_strided_slice %106 {offsets = [0, 64], sizes = [2, 32], strides = [1, 1]} : vector<2x128xf32> to vector<2x32xf32>
    %110 = vector.extract_strided_slice %105 {offsets = [0, 96], sizes = [2, 32], strides = [1, 1]} : vector<2x128xf32> to vector<2x32xf32>
    %111 = arith.mulf %108, %95 : vector<2x32xf32>
    %112 = arith.mulf %107, %109 : vector<2x32xf32>
    %113 = arith.addf %111, %112 : vector<2x32xf32>
    %114 = math.tanh %113 : vector<2x32xf32>
    %115 = arith.mulf %110, %114 : vector<2x32xf32>
    %116 = vector.extract_strided_slice %22 {offsets = [10, 0], sizes = [2, 128], strides = [1, 1]} : vector<16x128xf32> to vector<2x128xf32>
    %cst_20 = arith.constant dense<0.000000e+00> : vector<2x128xf32>
    %117 = tpu.matmul %115, %23, %cst_20 {dimension_numbers = #tpu.dot_dimension_numbers<[1], [0], [0], [1], [0, 0, 1, 1], [], []>} : vector<2x32xf32>, vector<32x128xf32>, vector<2x128xf32> -> vector<2x128xf32>
    %118 = arith.addf %116, %117 : vector<2x128xf32>
    %119 = arith.negf %118 : vector<2x128xf32>
    %120 = math.exp %119 : vector<2x128xf32>
    %cst_21 = arith.constant 1.000000e+00 : f32
    %121 = vector.broadcast %cst_21 : f32 to vector<2x128xf32>
    %122 = arith.addf %121, %120 : vector<2x128xf32>
    %123 = arith.divf %121, %122 : vector<2x128xf32>
    %124 = math.tanh %118 : vector<2x128xf32>
    %125 = vector.extract_strided_slice %123 {offsets = [0, 0], sizes = [2, 32], strides = [1, 1]} : vector<2x128xf32> to vector<2x32xf32>
    %126 = vector.extract_strided_slice %123 {offsets = [0, 32], sizes = [2, 32], strides = [1, 1]} : vector<2x128xf32> to vector<2x32xf32>
    %127 = vector.extract_strided_slice %124 {offsets = [0, 64], sizes = [2, 32], strides = [1, 1]} : vector<2x128xf32> to vector<2x32xf32>
    %128 = vector.extract_strided_slice %123 {offsets = [0, 96], sizes = [2, 32], strides = [1, 1]} : vector<2x128xf32> to vector<2x32xf32>
    %129 = arith.mulf %126, %113 : vector<2x32xf32>
    %130 = arith.mulf %125, %127 : vector<2x32xf32>
    %131 = arith.addf %129, %130 : vector<2x32xf32>
    %132 = math.tanh %131 : vector<2x32xf32>
    %133 = arith.mulf %128, %132 : vector<2x32xf32>
    %134 = vector.extract_strided_slice %22 {offsets = [12, 0], sizes = [2, 128], strides = [1, 1]} : vector<16x128xf32> to vector<2x128xf32>
    %cst_22 = arith.constant dense<0.000000e+00> : vector<2x128xf32>
    %135 = tpu.matmul %133, %23, %cst_22 {dimension_numbers = #tpu.dot_dimension_numbers<[1], [0], [0], [1], [0, 0, 1, 1], [], []>} : vector<2x32xf32>, vector<32x128xf32>, vector<2x128xf32> -> vector<2x128xf32>
    %136 = arith.addf %134, %135 : vector<2x128xf32>
    %137 = arith.negf %136 : vector<2x128xf32>
    %138 = math.exp %137 : vector<2x128xf32>
    %cst_23 = arith.constant 1.000000e+00 : f32
    %139 = vector.broadcast %cst_23 : f32 to vector<2x128xf32>
    %140 = arith.addf %139, %138 : vector<2x128xf32>
    %141 = arith.divf %139, %140 : vector<2x128xf32>
    %142 = math.tanh %136 : vector<2x128xf32>
    %143 = vector.extract_strided_slice %141 {offsets = [0, 0], sizes = [2, 32], strides = [1, 1]} : vector<2x128xf32> to vector<2x32xf32>
    %144 = vector.extract_strided_slice %141 {offsets = [0, 32], sizes = [2, 32], strides = [1, 1]} : vector<2x128xf32> to vector<2x32xf32>
    %145 = vector.extract_strided_slice %142 {offsets = [0, 64], sizes = [2, 32], strides = [1, 1]} : vector<2x128xf32> to vector<2x32xf32>
    %146 = vector.extract_strided_slice %141 {offsets = [0, 96], sizes = [2, 32], strides = [1, 1]} : vector<2x128xf32> to vector<2x32xf32>
    %147 = arith.mulf %144, %131 : vector<2x32xf32>
    %148 = arith.mulf %143, %145 : vector<2x32xf32>
    %149 = arith.addf %147, %148 : vector<2x32xf32>
    %150 = math.tanh %149 : vector<2x32xf32>
    %151 = arith.mulf %146, %150 : vector<2x32xf32>
    %152 = vector.extract_strided_slice %22 {offsets = [14, 0], sizes = [2, 128], strides = [1, 1]} : vector<16x128xf32> to vector<2x128xf32>
    %cst_24 = arith.constant dense<0.000000e+00> : vector<2x128xf32>
    %153 = tpu.matmul %151, %23, %cst_24 {dimension_numbers = #tpu.dot_dimension_numbers<[1], [0], [0], [1], [0, 0, 1, 1], [], []>} : vector<2x32xf32>, vector<32x128xf32>, vector<2x128xf32> -> vector<2x128xf32>
    %154 = arith.addf %152, %153 : vector<2x128xf32>
    %155 = arith.negf %154 : vector<2x128xf32>
    %156 = math.exp %155 : vector<2x128xf32>
    %cst_25 = arith.constant 1.000000e+00 : f32
    %157 = vector.broadcast %cst_25 : f32 to vector<2x128xf32>
    %158 = arith.addf %157, %156 : vector<2x128xf32>
    %159 = arith.divf %157, %158 : vector<2x128xf32>
    %160 = math.tanh %154 : vector<2x128xf32>
    %161 = vector.extract_strided_slice %159 {offsets = [0, 0], sizes = [2, 32], strides = [1, 1]} : vector<2x128xf32> to vector<2x32xf32>
    %162 = vector.extract_strided_slice %159 {offsets = [0, 32], sizes = [2, 32], strides = [1, 1]} : vector<2x128xf32> to vector<2x32xf32>
    %163 = vector.extract_strided_slice %160 {offsets = [0, 64], sizes = [2, 32], strides = [1, 1]} : vector<2x128xf32> to vector<2x32xf32>
    %164 = vector.extract_strided_slice %159 {offsets = [0, 96], sizes = [2, 32], strides = [1, 1]} : vector<2x128xf32> to vector<2x32xf32>
    %165 = arith.mulf %162, %149 : vector<2x32xf32>
    %166 = arith.mulf %161, %163 : vector<2x32xf32>
    %167 = arith.addf %165, %166 : vector<2x32xf32>
    %168 = math.tanh %167 : vector<2x32xf32>
    %169 = arith.mulf %164, %168 : vector<2x32xf32>
    %170 = tpu.concatenate %43, %61, %79, %97, %115, %133, %151, %169 in 0 : vector<2x32xf32>, vector<2x32xf32>, vector<2x32xf32>, vector<2x32xf32>, vector<2x32xf32>, vector<2x32xf32>, vector<2x32xf32>, vector<2x32xf32> -> vector<16x32xf32>
    %c0_26 = arith.constant 0 : index
    %c0_27 = arith.constant 0 : index
    %171 = vector.load %arg4[%c0_26, %c0_27] : memref<32x128xf32, #tpu.memory_space<vmem>>, vector<32x128xf32>
    %c0_28 = arith.constant 0 : index
    %c0_29 = arith.constant 0 : index
    %172 = vector.load %arg6[%c0_28, %c0_29] : memref<1x128xf32, #tpu.memory_space<vmem>>, vector<1x128xf32>
    %cst_30 = arith.constant dense<0.000000e+00> : vector<16x128xf32>
    %173 = tpu.matmul %170, %171, %cst_30 {dimension_numbers = #tpu.dot_dimension_numbers<[1], [0], [0], [1], [0, 0, 1, 1], [], []>} : vector<16x32xf32>, vector<32x128xf32>, vector<16x128xf32> -> vector<16x128xf32>
    %174 = vector.broadcast %172 : vector<1x128xf32> to vector<16x128xf32>
    %175 = arith.addf %173, %174 : vector<16x128xf32>
    %c0_31 = arith.constant 0 : index
    %c0_32 = arith.constant 0 : index
    %176 = vector.load %arg5[%c0_31, %c0_32] : memref<32x128xf32, #tpu.memory_space<vmem>>, vector<32x128xf32>
    %cst_33 = arith.constant 0.000000e+00 : f32
    %177 = vector.broadcast %cst_33 : f32 to vector<2x32xf32>
    %cst_34 = arith.constant 0.000000e+00 : f32
    %178 = vector.broadcast %cst_34 : f32 to vector<2x32xf32>
    %179 = vector.extract_strided_slice %175 {offsets = [0, 0], sizes = [2, 128], strides = [1, 1]} : vector<16x128xf32> to vector<2x128xf32>
    %cst_35 = arith.constant dense<0.000000e+00> : vector<2x128xf32>
    %180 = tpu.matmul %177, %176, %cst_35 {dimension_numbers = #tpu.dot_dimension_numbers<[1], [0], [0], [1], [0, 0, 1, 1], [], []>} : vector<2x32xf32>, vector<32x128xf32>, vector<2x128xf32> -> vector<2x128xf32>
    %181 = arith.addf %179, %180 : vector<2x128xf32>
    %182 = arith.negf %181 : vector<2x128xf32>
    %183 = math.exp %182 : vector<2x128xf32>
    %cst_36 = arith.constant 1.000000e+00 : f32
    %184 = vector.broadcast %cst_36 : f32 to vector<2x128xf32>
    %185 = arith.addf %184, %183 : vector<2x128xf32>
    %186 = arith.divf %184, %185 : vector<2x128xf32>
    %187 = math.tanh %181 : vector<2x128xf32>
    %188 = vector.extract_strided_slice %186 {offsets = [0, 0], sizes = [2, 32], strides = [1, 1]} : vector<2x128xf32> to vector<2x32xf32>
    %189 = vector.extract_strided_slice %186 {offsets = [0, 32], sizes = [2, 32], strides = [1, 1]} : vector<2x128xf32> to vector<2x32xf32>
    %190 = vector.extract_strided_slice %187 {offsets = [0, 64], sizes = [2, 32], strides = [1, 1]} : vector<2x128xf32> to vector<2x32xf32>
    %191 = vector.extract_strided_slice %186 {offsets = [0, 96], sizes = [2, 32], strides = [1, 1]} : vector<2x128xf32> to vector<2x32xf32>
    %192 = arith.mulf %189, %178 : vector<2x32xf32>
    %193 = arith.mulf %188, %190 : vector<2x32xf32>
    %194 = arith.addf %192, %193 : vector<2x32xf32>
    %195 = math.tanh %194 : vector<2x32xf32>
    %196 = arith.mulf %191, %195 : vector<2x32xf32>
    %197 = vector.extract_strided_slice %175 {offsets = [2, 0], sizes = [2, 128], strides = [1, 1]} : vector<16x128xf32> to vector<2x128xf32>
    %cst_37 = arith.constant dense<0.000000e+00> : vector<2x128xf32>
    %198 = tpu.matmul %196, %176, %cst_37 {dimension_numbers = #tpu.dot_dimension_numbers<[1], [0], [0], [1], [0, 0, 1, 1], [], []>} : vector<2x32xf32>, vector<32x128xf32>, vector<2x128xf32> -> vector<2x128xf32>
    %199 = arith.addf %197, %198 : vector<2x128xf32>
    %200 = arith.negf %199 : vector<2x128xf32>
    %201 = math.exp %200 : vector<2x128xf32>
    %cst_38 = arith.constant 1.000000e+00 : f32
    %202 = vector.broadcast %cst_38 : f32 to vector<2x128xf32>
    %203 = arith.addf %202, %201 : vector<2x128xf32>
    %204 = arith.divf %202, %203 : vector<2x128xf32>
    %205 = math.tanh %199 : vector<2x128xf32>
    %206 = vector.extract_strided_slice %204 {offsets = [0, 0], sizes = [2, 32], strides = [1, 1]} : vector<2x128xf32> to vector<2x32xf32>
    %207 = vector.extract_strided_slice %204 {offsets = [0, 32], sizes = [2, 32], strides = [1, 1]} : vector<2x128xf32> to vector<2x32xf32>
    %208 = vector.extract_strided_slice %205 {offsets = [0, 64], sizes = [2, 32], strides = [1, 1]} : vector<2x128xf32> to vector<2x32xf32>
    %209 = vector.extract_strided_slice %204 {offsets = [0, 96], sizes = [2, 32], strides = [1, 1]} : vector<2x128xf32> to vector<2x32xf32>
    %210 = arith.mulf %207, %194 : vector<2x32xf32>
    %211 = arith.mulf %206, %208 : vector<2x32xf32>
    %212 = arith.addf %210, %211 : vector<2x32xf32>
    %213 = math.tanh %212 : vector<2x32xf32>
    %214 = arith.mulf %209, %213 : vector<2x32xf32>
    %215 = vector.extract_strided_slice %175 {offsets = [4, 0], sizes = [2, 128], strides = [1, 1]} : vector<16x128xf32> to vector<2x128xf32>
    %cst_39 = arith.constant dense<0.000000e+00> : vector<2x128xf32>
    %216 = tpu.matmul %214, %176, %cst_39 {dimension_numbers = #tpu.dot_dimension_numbers<[1], [0], [0], [1], [0, 0, 1, 1], [], []>} : vector<2x32xf32>, vector<32x128xf32>, vector<2x128xf32> -> vector<2x128xf32>
    %217 = arith.addf %215, %216 : vector<2x128xf32>
    %218 = arith.negf %217 : vector<2x128xf32>
    %219 = math.exp %218 : vector<2x128xf32>
    %cst_40 = arith.constant 1.000000e+00 : f32
    %220 = vector.broadcast %cst_40 : f32 to vector<2x128xf32>
    %221 = arith.addf %220, %219 : vector<2x128xf32>
    %222 = arith.divf %220, %221 : vector<2x128xf32>
    %223 = math.tanh %217 : vector<2x128xf32>
    %224 = vector.extract_strided_slice %222 {offsets = [0, 0], sizes = [2, 32], strides = [1, 1]} : vector<2x128xf32> to vector<2x32xf32>
    %225 = vector.extract_strided_slice %222 {offsets = [0, 32], sizes = [2, 32], strides = [1, 1]} : vector<2x128xf32> to vector<2x32xf32>
    %226 = vector.extract_strided_slice %223 {offsets = [0, 64], sizes = [2, 32], strides = [1, 1]} : vector<2x128xf32> to vector<2x32xf32>
    %227 = vector.extract_strided_slice %222 {offsets = [0, 96], sizes = [2, 32], strides = [1, 1]} : vector<2x128xf32> to vector<2x32xf32>
    %228 = arith.mulf %225, %212 : vector<2x32xf32>
    %229 = arith.mulf %224, %226 : vector<2x32xf32>
    %230 = arith.addf %228, %229 : vector<2x32xf32>
    %231 = math.tanh %230 : vector<2x32xf32>
    %232 = arith.mulf %227, %231 : vector<2x32xf32>
    %233 = vector.extract_strided_slice %175 {offsets = [6, 0], sizes = [2, 128], strides = [1, 1]} : vector<16x128xf32> to vector<2x128xf32>
    %cst_41 = arith.constant dense<0.000000e+00> : vector<2x128xf32>
    %234 = tpu.matmul %232, %176, %cst_41 {dimension_numbers = #tpu.dot_dimension_numbers<[1], [0], [0], [1], [0, 0, 1, 1], [], []>} : vector<2x32xf32>, vector<32x128xf32>, vector<2x128xf32> -> vector<2x128xf32>
    %235 = arith.addf %233, %234 : vector<2x128xf32>
    %236 = arith.negf %235 : vector<2x128xf32>
    %237 = math.exp %236 : vector<2x128xf32>
    %cst_42 = arith.constant 1.000000e+00 : f32
    %238 = vector.broadcast %cst_42 : f32 to vector<2x128xf32>
    %239 = arith.addf %238, %237 : vector<2x128xf32>
    %240 = arith.divf %238, %239 : vector<2x128xf32>
    %241 = math.tanh %235 : vector<2x128xf32>
    %242 = vector.extract_strided_slice %240 {offsets = [0, 0], sizes = [2, 32], strides = [1, 1]} : vector<2x128xf32> to vector<2x32xf32>
    %243 = vector.extract_strided_slice %240 {offsets = [0, 32], sizes = [2, 32], strides = [1, 1]} : vector<2x128xf32> to vector<2x32xf32>
    %244 = vector.extract_strided_slice %241 {offsets = [0, 64], sizes = [2, 32], strides = [1, 1]} : vector<2x128xf32> to vector<2x32xf32>
    %245 = vector.extract_strided_slice %240 {offsets = [0, 96], sizes = [2, 32], strides = [1, 1]} : vector<2x128xf32> to vector<2x32xf32>
    %246 = arith.mulf %243, %230 : vector<2x32xf32>
    %247 = arith.mulf %242, %244 : vector<2x32xf32>
    %248 = arith.addf %246, %247 : vector<2x32xf32>
    %249 = math.tanh %248 : vector<2x32xf32>
    %250 = arith.mulf %245, %249 : vector<2x32xf32>
    %251 = vector.extract_strided_slice %175 {offsets = [8, 0], sizes = [2, 128], strides = [1, 1]} : vector<16x128xf32> to vector<2x128xf32>
    %cst_43 = arith.constant dense<0.000000e+00> : vector<2x128xf32>
    %252 = tpu.matmul %250, %176, %cst_43 {dimension_numbers = #tpu.dot_dimension_numbers<[1], [0], [0], [1], [0, 0, 1, 1], [], []>} : vector<2x32xf32>, vector<32x128xf32>, vector<2x128xf32> -> vector<2x128xf32>
    %253 = arith.addf %251, %252 : vector<2x128xf32>
    %254 = arith.negf %253 : vector<2x128xf32>
    %255 = math.exp %254 : vector<2x128xf32>
    %cst_44 = arith.constant 1.000000e+00 : f32
    %256 = vector.broadcast %cst_44 : f32 to vector<2x128xf32>
    %257 = arith.addf %256, %255 : vector<2x128xf32>
    %258 = arith.divf %256, %257 : vector<2x128xf32>
    %259 = math.tanh %253 : vector<2x128xf32>
    %260 = vector.extract_strided_slice %258 {offsets = [0, 0], sizes = [2, 32], strides = [1, 1]} : vector<2x128xf32> to vector<2x32xf32>
    %261 = vector.extract_strided_slice %258 {offsets = [0, 32], sizes = [2, 32], strides = [1, 1]} : vector<2x128xf32> to vector<2x32xf32>
    %262 = vector.extract_strided_slice %259 {offsets = [0, 64], sizes = [2, 32], strides = [1, 1]} : vector<2x128xf32> to vector<2x32xf32>
    %263 = vector.extract_strided_slice %258 {offsets = [0, 96], sizes = [2, 32], strides = [1, 1]} : vector<2x128xf32> to vector<2x32xf32>
    %264 = arith.mulf %261, %248 : vector<2x32xf32>
    %265 = arith.mulf %260, %262 : vector<2x32xf32>
    %266 = arith.addf %264, %265 : vector<2x32xf32>
    %267 = math.tanh %266 : vector<2x32xf32>
    %268 = arith.mulf %263, %267 : vector<2x32xf32>
    %269 = vector.extract_strided_slice %175 {offsets = [10, 0], sizes = [2, 128], strides = [1, 1]} : vector<16x128xf32> to vector<2x128xf32>
    %cst_45 = arith.constant dense<0.000000e+00> : vector<2x128xf32>
    %270 = tpu.matmul %268, %176, %cst_45 {dimension_numbers = #tpu.dot_dimension_numbers<[1], [0], [0], [1], [0, 0, 1, 1], [], []>} : vector<2x32xf32>, vector<32x128xf32>, vector<2x128xf32> -> vector<2x128xf32>
    %271 = arith.addf %269, %270 : vector<2x128xf32>
    %272 = arith.negf %271 : vector<2x128xf32>
    %273 = math.exp %272 : vector<2x128xf32>
    %cst_46 = arith.constant 1.000000e+00 : f32
    %274 = vector.broadcast %cst_46 : f32 to vector<2x128xf32>
    %275 = arith.addf %274, %273 : vector<2x128xf32>
    %276 = arith.divf %274, %275 : vector<2x128xf32>
    %277 = math.tanh %271 : vector<2x128xf32>
    %278 = vector.extract_strided_slice %276 {offsets = [0, 0], sizes = [2, 32], strides = [1, 1]} : vector<2x128xf32> to vector<2x32xf32>
    %279 = vector.extract_strided_slice %276 {offsets = [0, 32], sizes = [2, 32], strides = [1, 1]} : vector<2x128xf32> to vector<2x32xf32>
    %280 = vector.extract_strided_slice %277 {offsets = [0, 64], sizes = [2, 32], strides = [1, 1]} : vector<2x128xf32> to vector<2x32xf32>
    %281 = vector.extract_strided_slice %276 {offsets = [0, 96], sizes = [2, 32], strides = [1, 1]} : vector<2x128xf32> to vector<2x32xf32>
    %282 = arith.mulf %279, %266 : vector<2x32xf32>
    %283 = arith.mulf %278, %280 : vector<2x32xf32>
    %284 = arith.addf %282, %283 : vector<2x32xf32>
    %285 = math.tanh %284 : vector<2x32xf32>
    %286 = arith.mulf %281, %285 : vector<2x32xf32>
    %287 = vector.extract_strided_slice %175 {offsets = [12, 0], sizes = [2, 128], strides = [1, 1]} : vector<16x128xf32> to vector<2x128xf32>
    %cst_47 = arith.constant dense<0.000000e+00> : vector<2x128xf32>
    %288 = tpu.matmul %286, %176, %cst_47 {dimension_numbers = #tpu.dot_dimension_numbers<[1], [0], [0], [1], [0, 0, 1, 1], [], []>} : vector<2x32xf32>, vector<32x128xf32>, vector<2x128xf32> -> vector<2x128xf32>
    %289 = arith.addf %287, %288 : vector<2x128xf32>
    %290 = arith.negf %289 : vector<2x128xf32>
    %291 = math.exp %290 : vector<2x128xf32>
    %cst_48 = arith.constant 1.000000e+00 : f32
    %292 = vector.broadcast %cst_48 : f32 to vector<2x128xf32>
    %293 = arith.addf %292, %291 : vector<2x128xf32>
    %294 = arith.divf %292, %293 : vector<2x128xf32>
    %295 = math.tanh %289 : vector<2x128xf32>
    %296 = vector.extract_strided_slice %294 {offsets = [0, 0], sizes = [2, 32], strides = [1, 1]} : vector<2x128xf32> to vector<2x32xf32>
    %297 = vector.extract_strided_slice %294 {offsets = [0, 32], sizes = [2, 32], strides = [1, 1]} : vector<2x128xf32> to vector<2x32xf32>
    %298 = vector.extract_strided_slice %295 {offsets = [0, 64], sizes = [2, 32], strides = [1, 1]} : vector<2x128xf32> to vector<2x32xf32>
    %299 = vector.extract_strided_slice %294 {offsets = [0, 96], sizes = [2, 32], strides = [1, 1]} : vector<2x128xf32> to vector<2x32xf32>
    %300 = arith.mulf %297, %284 : vector<2x32xf32>
    %301 = arith.mulf %296, %298 : vector<2x32xf32>
    %302 = arith.addf %300, %301 : vector<2x32xf32>
    %303 = math.tanh %302 : vector<2x32xf32>
    %304 = arith.mulf %299, %303 : vector<2x32xf32>
    %305 = vector.extract_strided_slice %175 {offsets = [14, 0], sizes = [2, 128], strides = [1, 1]} : vector<16x128xf32> to vector<2x128xf32>
    %cst_49 = arith.constant dense<0.000000e+00> : vector<2x128xf32>
    %306 = tpu.matmul %304, %176, %cst_49 {dimension_numbers = #tpu.dot_dimension_numbers<[1], [0], [0], [1], [0, 0, 1, 1], [], []>} : vector<2x32xf32>, vector<32x128xf32>, vector<2x128xf32> -> vector<2x128xf32>
    %307 = arith.addf %305, %306 : vector<2x128xf32>
    %308 = arith.negf %307 : vector<2x128xf32>
    %309 = math.exp %308 : vector<2x128xf32>
    %cst_50 = arith.constant 1.000000e+00 : f32
    %310 = vector.broadcast %cst_50 : f32 to vector<2x128xf32>
    %311 = arith.addf %310, %309 : vector<2x128xf32>
    %312 = arith.divf %310, %311 : vector<2x128xf32>
    %313 = math.tanh %307 : vector<2x128xf32>
    %314 = vector.extract_strided_slice %312 {offsets = [0, 0], sizes = [2, 32], strides = [1, 1]} : vector<2x128xf32> to vector<2x32xf32>
    %315 = vector.extract_strided_slice %312 {offsets = [0, 32], sizes = [2, 32], strides = [1, 1]} : vector<2x128xf32> to vector<2x32xf32>
    %316 = vector.extract_strided_slice %313 {offsets = [0, 64], sizes = [2, 32], strides = [1, 1]} : vector<2x128xf32> to vector<2x32xf32>
    %317 = vector.extract_strided_slice %312 {offsets = [0, 96], sizes = [2, 32], strides = [1, 1]} : vector<2x128xf32> to vector<2x32xf32>
    %318 = arith.mulf %315, %302 : vector<2x32xf32>
    %319 = arith.mulf %314, %316 : vector<2x32xf32>
    %320 = arith.addf %318, %319 : vector<2x32xf32>
    %321 = math.tanh %320 : vector<2x32xf32>
    %322 = arith.mulf %317, %321 : vector<2x32xf32>
    %323 = vector.shape_cast %196 : vector<2x32xf32> to vector<2x1x32xf32>
    %324 = vector.shape_cast %214 : vector<2x32xf32> to vector<2x1x32xf32>
    %325 = vector.shape_cast %232 : vector<2x32xf32> to vector<2x1x32xf32>
    %326 = vector.shape_cast %250 : vector<2x32xf32> to vector<2x1x32xf32>
    %327 = vector.shape_cast %268 : vector<2x32xf32> to vector<2x1x32xf32>
    %328 = vector.shape_cast %286 : vector<2x32xf32> to vector<2x1x32xf32>
    %329 = vector.shape_cast %304 : vector<2x32xf32> to vector<2x1x32xf32>
    %330 = vector.shape_cast %322 : vector<2x32xf32> to vector<2x1x32xf32>
    %331 = tpu.concatenate %323, %324, %325, %326, %327, %328, %329, %330 in 1 : vector<2x1x32xf32>, vector<2x1x32xf32>, vector<2x1x32xf32>, vector<2x1x32xf32>, vector<2x1x32xf32>, vector<2x1x32xf32>, vector<2x1x32xf32>, vector<2x1x32xf32> -> vector<2x8x32xf32>
    %c0_51 = arith.constant 0 : index
    %c0_52 = arith.constant 0 : index
    %332 = vector.load %arg7[%c0_51, %c0_52] : memref<1x32xf32, #tpu.memory_space<vmem>>, vector<1x32xf32>
    %333 = vector.shape_cast %332 : vector<1x32xf32> to vector<1x1x32xf32>
    %c0_53 = arith.constant 0 : index
    %c0_54 = arith.constant 0 : index
    %334 = vector.load %arg8[%c0_53, %c0_54] : memref<1x32xf32, #tpu.memory_space<vmem>>, vector<1x32xf32>
    %335 = vector.shape_cast %334 : vector<1x32xf32> to vector<1x1x32xf32>
    %cst_55 = arith.constant dense<0.000000e+00> : vector<2x8xf32>
    %336 = vector.multi_reduction <add>, %331, %cst_55 [2] : vector<2x8x32xf32> to vector<2x8xf32>
    %337 = vector.shape_cast %336 : vector<2x8xf32> to vector<2x8x1xf32>
    %cst_56 = arith.constant 3.200000e+01 : f32
    %338 = vector.broadcast %cst_56 : f32 to vector<2x8x1xf32>
    %339 = arith.divf %337, %338 : vector<2x8x1xf32>
    %340 = vector.broadcast %339 : vector<2x8x1xf32> to vector<2x8x32xf32>
    %341 = arith.subf %331, %340 : vector<2x8x32xf32>
    %342 = arith.mulf %341, %341 : vector<2x8x32xf32>
    %cst_57 = arith.constant dense<0.000000e+00> : vector<2x8xf32>
    %343 = vector.multi_reduction <add>, %342, %cst_57 [2] : vector<2x8x32xf32> to vector<2x8xf32>
    %344 = vector.shape_cast %343 : vector<2x8xf32> to vector<2x8x1xf32>
    %cst_58 = arith.constant 3.200000e+01 : f32
    %345 = vector.broadcast %cst_58 : f32 to vector<2x8x1xf32>
    %346 = arith.divf %344, %345 : vector<2x8x1xf32>
    %cst_59 = arith.constant 9.99999974E-6 : f32
    %347 = vector.broadcast %cst_59 : f32 to vector<2x8x1xf32>
    %348 = arith.addf %346, %347 : vector<2x8x1xf32>
    %349 = math.rsqrt %348 : vector<2x8x1xf32>
    %350 = vector.broadcast %349 : vector<2x8x1xf32> to vector<2x8x32xf32>
    %351 = arith.mulf %341, %350 : vector<2x8x32xf32>
    %352 = vector.broadcast %333 : vector<1x1x32xf32> to vector<2x8x32xf32>
    %353 = arith.mulf %351, %352 : vector<2x8x32xf32>
    %354 = vector.broadcast %335 : vector<1x1x32xf32> to vector<2x8x32xf32>
    %355 = arith.addf %353, %354 : vector<2x8x32xf32>
    %c0_60 = arith.constant 0 : index
    %c0_61 = arith.constant 0 : index
    %c0_62 = arith.constant 0 : index
    %356 = vector.load %arg12[%c0_60, %c0_61, %c0_62] : memref<2x8x32xf32, #tpu.memory_space<vmem>>, vector<2x8x32xf32>
    tpu.vector_store %arg12[%c0_60, %c0_61, %c0_62], %355 {strides = array<i32>} : memref<2x8x32xf32, #tpu.memory_space<vmem>>, vector<2x8x32xf32>,
    %c0_63 = arith.constant 0 : index
    %c0_64 = arith.constant 0 : index
    %357 = vector.load %arg9[%c0_63, %c0_64] : memref<1x32xf32, #tpu.memory_space<vmem>>, vector<1x32xf32>
    %358 = vector.shape_cast %357 : vector<1x32xf32> to vector<1x1x32xf32>
    %359 = vector.broadcast %358 : vector<1x1x32xf32> to vector<2x8x32xf32>
    %360 = arith.mulf %355, %359 : vector<2x8x32xf32>
    %cst_65 = arith.constant dense<0.000000e+00> : vector<2x8xf32>
    %361 = vector.multi_reduction <add>, %360, %cst_65 [2] : vector<2x8x32xf32> to vector<2x8xf32>
    %c0_66 = arith.constant 0 : index
    %c0_67 = arith.constant 0 : index
    %362 = vector.load %arg10[%c0_66, %c0_67] : memref<1x1xf32, #tpu.memory_space<vmem>>, vector<1x1xf32>
    %363 = vector.broadcast %362 : vector<1x1xf32> to vector<2x8xf32>
    %364 = arith.addf %361, %363 : vector<2x8xf32>
    %365 = arith.negf %364 : vector<2x8xf32>
    %366 = math.exp %365 : vector<2x8xf32>
    %cst_68 = arith.constant 1.000000e+00 : f32
    %367 = vector.broadcast %cst_68 : f32 to vector<2x8xf32>
    %368 = arith.addf %367, %366 : vector<2x8xf32>
    %369 = arith.divf %367, %368 : vector<2x8xf32>
    %c0_69 = arith.constant 0 : index
    %c0_70 = arith.constant 0 : index
    %370 = vector.load %arg11[%c0_69, %c0_70] : memref<2x8xf32, #tpu.memory_space<vmem>>, vector<2x8xf32>
    tpu.vector_store %arg11[%c0_69, %c0_70], %369 {strides = array<i32>} : memref<2x8xf32, #tpu.memory_space<vmem>>, vector<2x8xf32>,
    return
  }
}

</mosaic_0001>

<llo_original>
// kernel: rnn_classifier_forward.1
$region0: #{rnn_classifier_forward.1}
  #allocation0 [shape = 'u32[]', space=smem, size = 0x4, offset = 0x4, fixed_abs, tag = 'smem constant byte address 0x4 - core index']
  #allocation1 [shape = 'u32[144,128]{1,0:T(1,128)}', space=vmem, size = 0x12000, scoped, tag = 'internal scratch']
  #allocation2 [shape = 'f32[1,1]{1,0:T(1,128)S(1)}', space=vmem, size = 0x200, scoped, tag = 'scoped memory for rnn_classifier_forward.1']
  %s0 = inlined_call_operand.hbm [shape: f32[2,8,16], index: 0, kind: input, shape index: {}]
  %s1 = inlined_call_operand.hbm [shape: f32[16,128], index: 1, kind: input, shape index: {}]
  %s2 = inlined_call_operand.hbm [shape: f32[32,128], index: 2, kind: input, shape index: {}]
  %s3 = inlined_call_operand.vmem [shape: f32[1,128], index: 3, kind: input, shape index: {}]
  %s4 = inlined_call_operand.hbm [shape: f32[32,128], index: 4, kind: input, shape index: {}]
  %s5 = inlined_call_operand.hbm [shape: f32[32,128], index: 5, kind: input, shape index: {}]
  %s6 = inlined_call_operand.vmem [shape: f32[1,128], index: 6, kind: input, shape index: {}]
  %s7 = inlined_call_operand.vmem [shape: f32[1,32], index: 7, kind: input, shape index: {}]
  %s8 = inlined_call_operand.hbm [shape: f32[1,32], index: 8, kind: input, shape index: {}]
  %s9 = inlined_call_operand.vmem [shape: f32[1,32], index: 9, kind: input, shape index: {}]
  %s10 = inlined_call_operand.<no memory space> [shape: f32[1,1], index: 10, kind: input, shape index: {}]
  %s11 = inlined_call_operand.hbm [shape: f32[2,8], index: 11, kind: output, shape index: {0}]
  %s12 = inlined_call_operand.hbm [shape: f32[2,8,32], index: 12, kind: output, shape index: {1}]
  %13 = xla_tuple %s11, %s12
  %s14 = sld [smem:[#allocation0]]
  $region86: #{rnn_classifier_forward.1} parent=0
    _
  %s16 = ssub.s32 1, %s14
  %s17 = scalar_select 0, %s16, %s14
  %v18 = vstv %s10
  %19 = vst [vmem:[#allocation2] sm:$0x1] %v18
  $region1: #{rnn_classifier_forward.1} parent=0
    #allocation3 [shape = 'u8[8192]{0}', space=vmem, size = 0x2000, scoped, tag = 'input window, operand 0, single buffered']
    #allocation4 [shape = 's32[1]{0}', space=sflag, size = 0x4, scoped, tag = 'scoped memory for rnn_classifier_forward.1']
    #allocation5 [shape = 's32[1]{0}', space=sflag, size = 0x4, scoped, tag = 'scoped memory for rnn_classifier_forward.1']
    #allocation6 [shape = 'u8[8192]{0}', space=vmem, size = 0x2000, scoped, tag = 'input window, operand 1, single buffered']
    #allocation7 [shape = 's32[1]{0}', space=sflag, size = 0x4, scoped, tag = 'scoped memory for rnn_classifier_forward.1']
    #allocation8 [shape = 'u8[16384]{0}', space=vmem, size = 0x4000, scoped, tag = 'input window, operand 2, single buffered']
    #allocation9 [shape = 'u8[16384]{0}', space=vmem, size = 0x4000, scoped, tag = 'input window, operand 4, single buffered']
    #allocation10 [shape = 's32[1]{0}', space=sflag, size = 0x4, scoped, tag = 'scoped memory for rnn_classifier_forward.1']
    #allocation11 [shape = 'u8[16384]{0}', space=vmem, size = 0x4000, scoped, tag = 'input window, operand 5, single buffered']
    #allocation12 [shape = 'u8[512]{0}', space=vmem, size = 0x400, scoped, tag = 'input window, operand 8, single buffered']
    #allocation13 [shape = 's32[1]{0}', space=sflag, size = 0x4, scoped, tag = 'scoped memory for rnn_classifier_forward.1']
    #allocation14 [shape = 'u8[1024]{0}', space=vmem, size = 0x400, scoped, tag = 'output window, operand 0, single buffered']
    #allocation15 [shape = 'u8[8192]{0}', space=vmem, size = 0x2000, scoped, tag = 'output window, operand 1, single buffered']
    #allocation16 [shape = 's32[1]{0}', space=sflag, size = 0x4, scoped, tag = 'scoped memory for rnn_classifier_forward.1']
    %20 = vsyncpa [#allocation4], 0
    %21 = vsyncpa [#allocation7], 0
    %22 = vsyncpa [#allocation10], 0
    %23 = vsyncpa [#allocation13], 0
    %24 = vsyncpa [#allocation5], 0
    %25 = vsyncpa [#allocation16], 0
    // Predicated region
    $region2: #{rnn_classifier_forward.1} parent=1 // pred_check
      _
    $region3: #{rnn_classifier_forward.1} parent=1 // pred_check_branch
      %27 = sbr.rel (0) target = $region5
    $region4: #{rnn_classifier_forward.1} parent=1 // pred_region
      %s29 = ssub.s32 256, 256
      %30 = vsyncadd [#allocation4], %s29
      %s31 = sshll.u32 [#allocation3], 4
      %s32 = int_to_ptr.vmem [resolvable:$true] %s31
      %37 = dma.hbm_to_vmem [thread:$0]  %s0, 256, %s32, [#allocation4], 128, 128, 8
    $region5: #{rnn_classifier_forward.1} parent=1 // pred_fallthru
      _
    // Predicated region
    $region6: #{rnn_classifier_forward.1} parent=1 // pred_check
      _
    $region7: #{rnn_classifier_forward.1} parent=1 // pred_check_branch
      %39 = sbr.rel (0) target = $region9
    $region8: #{rnn_classifier_forward.1} parent=1 // pred_region
      %s41 = ssub.s32 256, 256
      %42 = vsyncadd [#allocation7], %s41
      %s43 = sshll.u32 [#allocation6], 4
      %s44 = int_to_ptr.vmem [resolvable:$true] %s43
      %49 = dma.hbm_to_vmem [thread:$0]  %s1, 256, %s44, [#allocation7], 128, 128, 8
    $region9: #{rnn_classifier_forward.1} parent=1 // pred_fallthru
      _
    // Predicated region
    $region10: #{rnn_classifier_forward.1} parent=1 // pred_check
      _
    $region11: #{rnn_classifier_forward.1} parent=1 // pred_check_branch
      %51 = sbr.rel (0) target = $region13
    $region12: #{rnn_classifier_forward.1} parent=1 // pred_region
      %s53 = ssub.s32 512, 512
      %54 = vsyncadd [#allocation7], %s53
      %s55 = sshll.u32 [#allocation8], 4
      %s56 = int_to_ptr.vmem [resolvable:$true] %s55
      %61 = dma.hbm_to_vmem [thread:$0]  %s2, 512, %s56, [#allocation7], 128, 128, 8
    $region13: #{rnn_classifier_forward.1} parent=1 // pred_fallthru
      _
    // Predicated region
    $region14: #{rnn_classifier_forward.1} parent=1 // pred_check
      _
    $region15: #{rnn_classifier_forward.1} parent=1 // pred_check_branch
      %63 = sbr.rel (0) target = $region17
    $region16: #{rnn_classifier_forward.1} parent=1 // pred_region
      _
    $region17: #{rnn_classifier_forward.1} parent=1 // pred_fallthru
      _
    // Predicated region
    $region18: #{rnn_classifier_forward.1} parent=1 // pred_check
      _
    $region19: #{rnn_classifier_forward.1} parent=1 // pred_check_branch
      %65 = sbr.rel (0) target = $region21
    $region20: #{rnn_classifier_forward.1} parent=1 // pred_region
      %s67 = ssub.s32 512, 512
      %68 = vsyncadd [#allocation10], %s67
      %s69 = sshll.u32 [#allocation9], 4
      %s70 = int_to_ptr.vmem [resolvable:$true] %s69
      %75 = dma.hbm_to_vmem [thread:$0]  %s4, 512, %s70, [#allocation10], 128, 128, 8
    $region21: #{rnn_classifier_forward.1} parent=1 // pred_fallthru
      _
    // Predicated region
    $region22: #{rnn_classifier_forward.1} parent=1 // pred_check
      _
    $region23: #{rnn_classifier_forward.1} parent=1 // pred_check_branch
      %77 = sbr.rel (0) target = $region25
    $region24: #{rnn_classifier_forward.1} parent=1 // pred_region
      %s79 = ssub.s32 512, 512
      %80 = vsyncadd [#allocation10], %s79
      %s81 = sshll.u32 [#allocation11], 4
      %s82 = int_to_ptr.vmem [resolvable:$true] %s81
      %87 = dma.hbm_to_vmem [thread:$0]  %s5, 512, %s82, [#allocation10], 128, 128, 8
    $region25: #{rnn_classifier_forward.1} parent=1 // pred_fallthru
      _
    // Predicated region
    $region26: #{rnn_classifier_forward.1} parent=1 // pred_check
      _
    $region27: #{rnn_classifier_forward.1} parent=1 // pred_check_branch
      %89 = sbr.rel (0) target = $region29
    $region28: #{rnn_classifier_forward.1} parent=1 // pred_region
      _
    $region29: #{rnn_classifier_forward.1} parent=1 // pred_fallthru
      _
    // Predicated region
    $region30: #{rnn_classifier_forward.1} parent=1 // pred_check
      _
    $region31: #{rnn_classifier_forward.1} parent=1 // pred_check_branch
      %91 = sbr.rel (0) target = $region33
    $region32: #{rnn_classifier_forward.1} parent=1 // pred_region
      _
    $region33: #{rnn_classifier_forward.1} parent=1 // pred_fallthru
      _
    // Predicated region
    $region34: #{rnn_classifier_forward.1} parent=1 // pred_check
      _
    $region35: #{rnn_classifier_forward.1} parent=1 // pred_check_branch
      %93 = sbr.rel (0) target = $region37
    $region36: #{rnn_classifier_forward.1} parent=1 // pred_region
      %s95 = ssub.s32 16, 16
      %96 = vsyncadd [#allocation13], %s95
      %s98 = sshll.u32 [#allocation12], 4
      %s99 = int_to_ptr.vmem [resolvable:$true] %s98
      %101 = dma.hbm_to_vmem [thread:$0]  %s8, 16, %s99, [#allocation13]
    $region37: #{rnn_classifier_forward.1} parent=1 // pred_fallthru
      _
    // Predicated region
    $region38: #{rnn_classifier_forward.1} parent=1 // pred_check
      _
    $region39: #{rnn_classifier_forward.1} parent=1 // pred_check_branch
      %103 = sbr.rel (0) target = $region41
    $region40: #{rnn_classifier_forward.1} parent=1 // pred_region
      _
    $region41: #{rnn_classifier_forward.1} parent=1 // pred_fallthru
      _
    // Predicated region
    $region42: #{rnn_classifier_forward.1} parent=1 // pred_check
      _
    $region43: #{rnn_classifier_forward.1} parent=1 // pred_check_branch
      %105 = sbr.rel (0) target = $region45
    $region44: #{rnn_classifier_forward.1} parent=1 // pred_region
      _
    $region45: #{rnn_classifier_forward.1} parent=1 // pred_fallthru
      _
    // Predicated region
    $region46: #{rnn_classifier_forward.1} parent=1 // pred_check
      _
    $region47: #{rnn_classifier_forward.1} parent=1 // pred_check_branch
      %107 = sbr.rel (0) target = $region49
    $region48: #{rnn_classifier_forward.1} parent=1 // pred_region
      %108 = dma.done [#allocation4], 256
    $region49: #{rnn_classifier_forward.1} parent=1 // pred_fallthru
      _
    // Predicated region
    $region50: #{rnn_classifier_forward.1} parent=1 // pred_check
      _
    $region51: #{rnn_classifier_forward.1} parent=1 // pred_check_branch
      %110 = sbr.rel (0) target = $region53
    $region52: #{rnn_classifier_forward.1} parent=1 // pred_region
      %111 = dma.done [#allocation7], 256
    $region53: #{rnn_classifier_forward.1} parent=1 // pred_fallthru
      _
    // Predicated region
    $region54: #{rnn_classifier_forward.1} parent=1 // pred_check
      _
    $region55: #{rnn_classifier_forward.1} parent=1 // pred_check_branch
      %113 = sbr.rel (0) target = $region57
    $region56: #{rnn_classifier_forward.1} parent=1 // pred_region
      %114 = dma.done [#allocation7], 512
    $region57: #{rnn_classifier_forward.1} parent=1 // pred_fallthru
      _
    // Predicated region
    $region58: #{rnn_classifier_forward.1} parent=1 // pred_check
      _
    $region59: #{rnn_classifier_forward.1} parent=1 // pred_check_branch
      %116 = sbr.rel (0) target = $region61
    $region60: #{rnn_classifier_forward.1} parent=1 // pred_region
      %117 = dma.done [#allocation10], 512
    $region61: #{rnn_classifier_forward.1} parent=1 // pred_fallthru
      _
    // Predicated region
    $region62: #{rnn_classifier_forward.1} parent=1 // pred_check
      _
    $region63: #{rnn_classifier_forward.1} parent=1 // pred_check_branch
      %119 = sbr.rel (0) target = $region65
    $region64: #{rnn_classifier_forward.1} parent=1 // pred_region
      %120 = dma.done [#allocation10], 512
    $region65: #{rnn_classifier_forward.1} parent=1 // pred_fallthru
      _
    // Predicated region
    $region66: #{rnn_classifier_forward.1} parent=1 // pred_check
      _
    $region67: #{rnn_classifier_forward.1} parent=1 // pred_check_branch
      %122 = sbr.rel (0) target = $region69
    $region68: #{rnn_classifier_forward.1} parent=1 // pred_region
      %123 = dma.done [#allocation13], 16
    $region69: #{rnn_classifier_forward.1} parent=1 // pred_fallthru
      _
    %v124 = vld [vmem:[#allocation3] sm:$0xff]
    %v125 = vld [vmem:[#allocation3 + $0x8] sm:$0xff]
    %v128 = vrot.slane %v125, 7
    %vm129 = vcmask 1041409
    %v130 = vsel %vm129, %v128, %v124
    %v132 = vrot.slane %v124, 7
    %v133 = vrot.slane %v125, 6
    %vm134 = vcmask 1043459
    %v135 = vsel %vm134, %v133, %v132
    %v137 = vrot.slane %v124, 6
    %v138 = vrot.slane %v125, 5
    %vm139 = vcmask 1045509
    %v140 = vsel %vm139, %v138, %v137
    %v142 = vrot.slane %v124, 5
    %v143 = vrot.slane %v125, 4
    %vm144 = vcmask 1047559
    %v145 = vsel %vm144, %v143, %v142
    %v147 = vrot.slane %v124, 4
    %v148 = vrot.slane %v125, 3
    %v149 = vsel %vm129, %v148, %v147
    %v151 = vrot.slane %v124, 3
    %v152 = vrot.slane %v125, 2
    %v153 = vsel %vm134, %v152, %v151
    %v155 = vrot.slane %v124, 2
    %v156 = vrot.slane %v125, 1
    %v157 = vsel %vm139, %v156, %v155
    %v159 = vrot.slane %v124, 1
    %v160 = vsel %vm144, %v125, %v159
    %vm162 = vcmask 1041408
    %v163 = vsel %vm162, %v130, %v135
    %vm164 = vcmask 1043456
    %v165 = vsel %vm164, %v163, %v140
    %vm166 = vcmask 1045504
    %v167 = vsel %vm166, %v165, %v145
    %v168 = vsel %vm162, %v149, %v153
    %v169 = vsel %vm164, %v168, %v157
    %v170 = vsel %vm166, %v169, %v160
    %v171 = vld [vmem:[#allocation6] sm:$0xff]
    %v172 = vld [vmem:[#allocation6 + $0x8] sm:$0xff]
    %v173 = vld [vmem:[%s3] sm:$0x1]
    %v175 = vlaneseq
    %v176 = vshrl.u32 %v175, 7
    %v177 = vsub.s32 0, %v176
    %v178 = vrot.slane %v173, %v177
    %vm180 = vcmask 130048
    %v182 = vsel %vm180, %v167, 0
    %v185 = vsel %vm180, %v170, 0
    %187 = vmatprep.subr.mxu0 0.0
    %188 = vmatpush1.msra.mxu0 0.0
    %189 = vmatprep.subr.mxu0 0.0
    %190 = vmatpush1.msra.mxu0 0.0
    %191 = vmatprep.subr.mxu0 0.0
    %192 = vmatpush1.msra.mxu0 0.0
    %193 = vmatprep.subr.mxu0 0.0
    %194 = vmatpush1.msra.mxu0 0.0
    %195 = vmatprep.subr.mxu0 0.0
    %196 = vmatpush1.msra.mxu0 0.0
    %197 = vmatprep.subr.mxu0 0.0
    %198 = vmatpush1.msra.mxu0 0.0
    %199 = vmatprep.subr.mxu0 0.0
    %200 = vmatpush1.msra.mxu0 0.0
    %201 = vmatprep.subr.mxu0 0.0
    %202 = vmatpush1.msra.mxu0 0.0
    %203 = vmatprep.subr.mxu0 0.0
    %204 = vmatpush1.msra.mxu0 0.0
    %205 = vmatprep.subr.mxu0 0.0
    %206 = vmatpush1.msra.mxu0 0.0
    %207 = vmatprep.subr.mxu0 0.0
    %208 = vmatpush1.msra.mxu0 0.0
    %209 = vmatprep.subr.mxu0 0.0
    %210 = vmatpush1.msra.mxu0 0.0
    %211 = vmatprep.subr.mxu0 0.0
    %212 = vmatpush1.msra.mxu0 0.0
    %213 = vmatprep.subr.mxu0 0.0
    %214 = vmatpush1.msra.mxu0 0.0
    %215 = vmatprep.subr.mxu0 0.0
    %216 = vmatpush1.msra.mxu0 %v172
    %217 = vmatprep.subr.mxu0 0.0
    %218 = vmatpush1.msra.mxu0 %v171
    %219 = vmatprep.subr.mxu0 0.0
    %220 = vmatpush2.msra.mxu0 0.0
    %221 = vmatprep.subr.mxu0 0.0
    %222 = vmatpush2.msra.mxu0 0.0
    %223 = vmatprep.subr.mxu0 0.0
    %224 = vmatpush2.msra.mxu0 0.0
    %225 = vmatprep.subr.mxu0 0.0
    %226 = vmatpush2.msra.mxu0 0.0
    %227 = vmatprep.subr.mxu0 0.0
    %228 = vmatpush2.msra.mxu0 0.0
    %229 = vmatprep.subr.mxu0 0.0
    %230 = vmatpush2.msra.mxu0 0.0
    %231 = vmatprep.subr.mxu0 0.0
    %232 = vmatpush2.msra.mxu0 0.0
    %233 = vmatprep.subr.mxu0 0.0
    %234 = vmatpush2.msra.mxu0 0.0
    %235 = vmatprep.subr.mxu0 0.0
    %236 = vmatpush2.msra.mxu0 0.0
    %237 = vmatprep.subr.mxu0 0.0
    %238 = vmatpush2.msra.mxu0 0.0
    %239 = vmatprep.subr.mxu0 0.0
    %240 = vmatpush2.msra.mxu0 0.0
    %241 = vmatprep.subr.mxu0 0.0
    %242 = vmatpush2.msra.mxu0 0.0
    %243 = vmatprep.subr.mxu0 0.0
    %244 = vmatpush2.msra.mxu0 0.0
    %245 = vmatprep.subr.mxu0 0.0
    %246 = vmatpush2.msra.mxu0 0.0
    %247 = vmatprep.subr.mxu0 0.0
    %248 = vmatpush2.msra.mxu0 0.0
    %249 = vmatprep.subr.mxu0 0.0
    %250 = vmatpush2.msra.mxu0 0.0
    %251 = vmatprep.mubr.f32.mxu0 0.0
    %252 = vmatmul.mubr.f32.gmra.mxu0 %v182
    %v253 = vpop.f32.mrf.mxu0
    %v254 = vadd.f32 %v178, %v253
    %v255 = vpop.f32.mrf.mxu0
    %256 = vmatprep.mubr.f32.mxu0 0.0
    %257 = vmatmul.mubr.f32.gmra.mxu0 %v185
    %v258 = vpop.f32.mrf.mxu0
    %v259 = vadd.f32 %v178, %v258
    %v260 = vpop.f32.mrf.mxu0
    %261 = vdwg.mxu0
    %v262 = vld [vmem:[#allocation8] sm:$0xff]
    %v263 = vld [vmem:[#allocation8 + $0x8] sm:$0xff]
    %v264 = vld [vmem:[#allocation8 + $0x10] sm:$0xff]
    %v265 = vld [vmem:[#allocation8 + $0x18] sm:$0xff]
    %vm266 = vcmask 261120
    %v268 = vsel %vm266, 0.0, 0
    %270 = vmatprep.subr.mxu0 0.0
    %271 = vmatpush1.msra.mxu0 0.0
    %272 = vmatprep.subr.mxu0 0.0
    %273 = vmatpush1.msra.mxu0 0.0
    %274 = vmatprep.subr.mxu0 0.0
    %275 = vmatpush1.msra.mxu0 0.0
    %276 = vmatprep.subr.mxu0 0.0
    %277 = vmatpush1.msra.mxu0 0.0
    %278 = vmatprep.subr.mxu0 0.0
    %279 = vmatpush1.msra.mxu0 0.0
    %280 = vmatprep.subr.mxu0 0.0
    %281 = vmatpush1.msra.mxu0 0.0
    %282 = vmatprep.subr.mxu0 0.0
    %283 = vmatpush1.msra.mxu0 0.0
    %284 = vmatprep.subr.mxu0 0.0
    %285 = vmatpush1.msra.mxu0 0.0
    %286 = vmatprep.subr.mxu0 0.0
    %287 = vmatpush1.msra.mxu0 0.0
    %288 = vmatprep.subr.mxu0 0.0
    %289 = vmatpush1.msra.mxu0 0.0
    %290 = vmatprep.subr.mxu0 0.0
    %291 = vmatpush1.msra.mxu0 0.0
    %292 = vmatprep.subr.mxu0 0.0
    %293 = vmatpush1.msra.mxu0 0.0
    %294 = vmatprep.subr.mxu0 0.0
    %295 = vmatpush1.msra.mxu0 %v265
    %296 = vmatprep.subr.mxu0 0.0
    %297 = vmatpush1.msra.mxu0 %v264
    %298 = vmatprep.subr.mxu0 0.0
    %299 = vmatpush1.msra.mxu0 %v263
    %300 = vmatprep.subr.mxu0 0.0
    %301 = vmatpush1.msra.mxu0 %v262
    %302 = vmatprep.subr.mxu0 0.0
    %303 = vmatpush2.msra.mxu0 0.0
    %304 = vmatprep.subr.mxu0 0.0
    %305 = vmatpush2.msra.mxu0 0.0
    %306 = vmatprep.subr.mxu0 0.0
    %307 = vmatpush2.msra.mxu0 0.0
    %308 = vmatprep.subr.mxu0 0.0
    %309 = vmatpush2.msra.mxu0 0.0
    %310 = vmatprep.subr.mxu0 0.0
    %311 = vmatpush2.msra.mxu0 0.0
    %312 = vmatprep.subr.mxu0 0.0
    %313 = vmatpush2.msra.mxu0 0.0
    %314 = vmatprep.subr.mxu0 0.0
    %315 = vmatpush2.msra.mxu0 0.0
    %316 = vmatprep.subr.mxu0 0.0
    %317 = vmatpush2.msra.mxu0 0.0
    %318 = vmatprep.subr.mxu0 0.0
    %319 = vmatpush2.msra.mxu0 0.0
    %320 = vmatprep.subr.mxu0 0.0
    %321 = vmatpush2.msra.mxu0 0.0
    %322 = vmatprep.subr.mxu0 0.0
    %323 = vmatpush2.msra.mxu0 0.0
    %324 = vmatprep.subr.mxu0 0.0
    %325 = vmatpush2.msra.mxu0 0.0
    %326 = vmatprep.subr.mxu0 0.0
    %327 = vmatpush2.msra.mxu0 0.0
    %328 = vmatprep.subr.mxu0 0.0
    %329 = vmatpush2.msra.mxu0 0.0
    %330 = vmatprep.subr.mxu0 0.0
    %331 = vmatpush2.msra.mxu0 0.0
    %332 = vmatprep.subr.mxu0 0.0
    %333 = vmatpush2.msra.mxu0 0.0
    %334 = vmatprep.mubr.f32.mxu0 0.0
    %335 = vmatmul.mubr.f32.gmra.mxu0 %v268
    %v336 = vpop.f32.mrf.mxu0
    %v337 = vadd.f32 0.0, %v336
    %v338 = vpop.f32.mrf.mxu0
    %339 = vdwg.mxu0
    %v340 = vadd.f32 %v254, %v337
    %v341 = vxor.u32 %v340, 2147483648
    %v342 = vmul.f32 %v341, 1.442695
    %v343 = vpow.pop %v342
    %v344 = vadd.f32 %v343, 1.0
    %v345 = vrcp.pop %v344
    %v346 = vmul.f32 1.0, %v345
    %v347 = vtanh.pop %v340
    %v348 = vmul.f32 %v346, 0.0
    %350 = vrot.lane.b32.xlu0 %v347, 64
    %v351 = vpop.permute.xlu0 %350
    %v353 = vmul.f32 %v346, %v351
    %355 = vrot.lane.b32.xlu0 %v353, 32
    %v356 = vpop.permute.xlu0 %355
    %v358 = vadd.f32 %v348, %v356
    %v359 = vtanh.pop %v358
    %361 = vrot.lane.b32.xlu0 %v359, 64
    %v362 = vpop.permute.xlu0 %361
    %v364 = vmul.f32 %v346, %v362
    %366 = vrot.lane.b32.xlu0 %v364, 32
    %v367 = vpop.permute.xlu0 %366
    %v368 = vsel %vm266, %v367, 0
    %370 = vmatprep.subr.mxu0 0.0
    %371 = vmatpush1.msra.mxu0 0.0
    %372 = vmatprep.subr.mxu0 0.0
    %373 = vmatpush1.msra.mxu0 0.0
    %374 = vmatprep.subr.mxu0 0.0
    %375 = vmatpush1.msra.mxu0 0.0
    %376 = vmatprep.subr.mxu0 0.0
    %377 = vmatpush1.msra.mxu0 0.0
    %378 = vmatprep.subr.mxu0 0.0
    %379 = vmatpush1.msra.mxu0 0.0
    %380 = vmatprep.subr.mxu0 0.0
    %381 = vmatpush1.msra.mxu0 0.0
    %382 = vmatprep.subr.mxu0 0.0
    %383 = vmatpush1.msra.mxu0 0.0
    %384 = vmatprep.subr.mxu0 0.0
    %385 = vmatpush1.msra.mxu0 0.0
    %386 = vmatprep.subr.mxu0 0.0
    %387 = vmatpush1.msra.mxu0 0.0
    %388 = vmatprep.subr.mxu0 0.0
    %389 = vmatpush1.msra.mxu0 0.0
    %390 = vmatprep.subr.mxu0 0.0
    %391 = vmatpush1.msra.mxu0 0.0
    %392 = vmatprep.subr.mxu0 0.0
    %393 = vmatpush1.msra.mxu0 0.0
    %394 = vmatprep.subr.mxu0 0.0
    %395 = vmatpush1.msra.mxu0 %v265
    %396 = vmatprep.subr.mxu0 0.0
    %397 = vmatpush1.msra.mxu0 %v264
    %398 = vmatprep.subr.mxu0 0.0
    %399 = vmatpush1.msra.mxu0 %v263
    %400 = vmatprep.subr.mxu0 0.0
    %401 = vmatpush1.msra.mxu0 %v262
    %402 = vmatprep.subr.mxu0 0.0
    %403 = vmatpush2.msra.mxu0 0.0
    %404 = vmatprep.subr.mxu0 0.0
    %405 = vmatpush2.msra.mxu0 0.0
    %406 = vmatprep.subr.mxu0 0.0
    %407 = vmatpush2.msra.mxu0 0.0
    %408 = vmatprep.subr.mxu0 0.0
    %409 = vmatpush2.msra.mxu0 0.0
    %410 = vmatprep.subr.mxu0 0.0
    %411 = vmatpush2.msra.mxu0 0.0
    %412 = vmatprep.subr.mxu0 0.0
    %413 = vmatpush2.msra.mxu0 0.0
    %414 = vmatprep.subr.mxu0 0.0
    %415 = vmatpush2.msra.mxu0 0.0
    %416 = vmatprep.subr.mxu0 0.0
    %417 = vmatpush2.msra.mxu0 0.0
    %418 = vmatprep.subr.mxu0 0.0
    %419 = vmatpush2.msra.mxu0 0.0
    %420 = vmatprep.subr.mxu0 0.0
    %421 = vmatpush2.msra.mxu0 0.0
    %422 = vmatprep.subr.mxu0 0.0
    %423 = vmatpush2.msra.mxu0 0.0
    %424 = vmatprep.subr.mxu0 0.0
    %425 = vmatpush2.msra.mxu0 0.0
    %426 = vmatprep.subr.mxu0 0.0
    %427 = vmatpush2.msra.mxu0 0.0
    %428 = vmatprep.subr.mxu0 0.0
    %429 = vmatpush2.msra.mxu0 0.0
    %430 = vmatprep.subr.mxu0 0.0
    %431 = vmatpush2.msra.mxu0 0.0
    %432 = vmatprep.subr.mxu0 0.0
    %433 = vmatpush2.msra.mxu0 0.0
    %434 = vmatprep.mubr.f32.mxu0 0.0
    %435 = vmatmul.mubr.f32.gmra.mxu0 %v368
    %v436 = vpop.f32.mrf.mxu0
    %v437 = vadd.f32 0.0, %v436
    %v438 = vpop.f32.mrf.mxu0
    %439 = vdwg.mxu0
    %v441 = vrot.slane %v437, 6
    %v443 = vadd.f32 %v254, %v441
    %v444 = vxor.u32 %v443, 2147483648
    %v445 = vmul.f32 %v444, 1.442695
    %v446 = vpow.pop %v445
    %v447 = vadd.f32 %v446, 1.0
    %v448 = vrcp.pop %v447
    %v449 = vmul.f32 1.0, %v448
    %v450 = vtanh.pop %v443
    %v452 = vrot.slane %v358, 6
    %v454 = vmul.f32 %v449, %v452
    %456 = vrot.lane.b32.xlu0 %v450, 64
    %v457 = vpop.permute.xlu0 %456
    %v459 = vmul.f32 %v449, %v457
    %461 = vrot.lane.b32.xlu0 %v459, 32
    %v462 = vpop.permute.xlu0 %461
    %v464 = vadd.f32 %v454, %v462
    %v465 = vtanh.pop %v464
    %467 = vrot.lane.b32.xlu0 %v465, 64
    %v468 = vpop.permute.xlu0 %467
    %v470 = vmul.f32 %v449, %v468
    %v472 = vrot.slane %v470, 2
    %473 = vrot.lane.b32.xlu0 %v472, 32
    %v474 = vpop.permute.xlu0 %473
    %v475 = vsel %vm266, %v474, 0
    %477 = vmatprep.subr.mxu0 0.0
    %478 = vmatpush1.msra.mxu0 0.0
    %479 = vmatprep.subr.mxu0 0.0
    %480 = vmatpush1.msra.mxu0 0.0
    %481 = vmatprep.subr.mxu0 0.0
    %482 = vmatpush1.msra.mxu0 0.0
    %483 = vmatprep.subr.mxu0 0.0
    %484 = vmatpush1.msra.mxu0 0.0
    %485 = vmatprep.subr.mxu0 0.0
    %486 = vmatpush1.msra.mxu0 0.0
    %487 = vmatprep.subr.mxu0 0.0
    %488 = vmatpush1.msra.mxu0 0.0
    %489 = vmatprep.subr.mxu0 0.0
    %490 = vmatpush1.msra.mxu0 0.0
    %491 = vmatprep.subr.mxu0 0.0
    %492 = vmatpush1.msra.mxu0 0.0
    %493 = vmatprep.subr.mxu0 0.0
    %494 = vmatpush1.msra.mxu0 0.0
    %495 = vmatprep.subr.mxu0 0.0
    %496 = vmatpush1.msra.mxu0 0.0
    %497 = vmatprep.subr.mxu0 0.0
    %498 = vmatpush1.msra.mxu0 0.0
    %499 = vmatprep.subr.mxu0 0.0
    %500 = vmatpush1.msra.mxu0 0.0
    %501 = vmatprep.subr.mxu0 0.0
    %502 = vmatpush1.msra.mxu0 %v265
    %503 = vmatprep.subr.mxu0 0.0
    %504 = vmatpush1.msra.mxu0 %v264
    %505 = vmatprep.subr.mxu0 0.0
    %506 = vmatpush1.msra.mxu0 %v263
    %507 = vmatprep.subr.mxu0 0.0
    %508 = vmatpush1.msra.mxu0 %v262
    %509 = vmatprep.subr.mxu0 0.0
    %510 = vmatpush2.msra.mxu0 0.0
    %511 = vmatprep.subr.mxu0 0.0
    %512 = vmatpush2.msra.mxu0 0.0
    %513 = vmatprep.subr.mxu0 0.0
    %514 = vmatpush2.msra.mxu0 0.0
    %515 = vmatprep.subr.mxu0 0.0
    %516 = vmatpush2.msra.mxu0 0.0
    %517 = vmatprep.subr.mxu0 0.0
    %518 = vmatpush2.msra.mxu0 0.0
    %519 = vmatprep.subr.mxu0 0.0
    %520 = vmatpush2.msra.mxu0 0.0
    %521 = vmatprep.subr.mxu0 0.0
    %522 = vmatpush2.msra.mxu0 0.0
    %523 = vmatprep.subr.mxu0 0.0
    %524 = vmatpush2.msra.mxu0 0.0
    %525 = vmatprep.subr.mxu0 0.0
    %526 = vmatpush2.msra.mxu0 0.0
    %527 = vmatprep.subr.mxu0 0.0
    %528 = vmatpush2.msra.mxu0 0.0
    %529 = vmatprep.subr.mxu0 0.0
    %530 = vmatpush2.msra.mxu0 0.0
    %531 = vmatprep.subr.mxu0 0.0
    %532 = vmatpush2.msra.mxu0 0.0
    %533 = vmatprep.subr.mxu0 0.0
    %534 = vmatpush2.msra.mxu0 0.0
    %535 = vmatprep.subr.mxu0 0.0
    %536 = vmatpush2.msra.mxu0 0.0
    %537 = vmatprep.subr.mxu0 0.0
    %538 = vmatpush2.msra.mxu0 0.0
    %539 = vmatprep.subr.mxu0 0.0
    %540 = vmatpush2.msra.mxu0 0.0
    %541 = vmatprep.mubr.f32.mxu0 0.0
    %542 = vmatmul.mubr.f32.gmra.mxu0 %v475
    %v543 = vpop.f32.mrf.mxu0
    %v544 = vadd.f32 0.0, %v543
    %v545 = vpop.f32.mrf.mxu0
    %546 = vdwg.mxu0
    %v548 = vrot.slane %v544, 4
    %v550 = vadd.f32 %v254, %v548
    %v551 = vxor.u32 %v550, 2147483648
    %v552 = vmul.f32 %v551, 1.442695
    %v553 = vpow.pop %v552
    %v554 = vadd.f32 %v553, 1.0
    %v555 = vrcp.pop %v554
    %v556 = vmul.f32 1.0, %v555
    %v557 = vtanh.pop %v550
    %v559 = vrot.slane %v464, 6
    %v561 = vmul.f32 %v556, %v559
    %563 = vrot.lane.b32.xlu0 %v557, 64
    %v564 = vpop.permute.xlu0 %563
    %v566 = vmul.f32 %v556, %v564
    %568 = vrot.lane.b32.xlu0 %v566, 32
    %v569 = vpop.permute.xlu0 %568
    %v571 = vadd.f32 %v561, %v569
    %v572 = vtanh.pop %v571
    %574 = vrot.lane.b32.xlu0 %v572, 64
    %v575 = vpop.permute.xlu0 %574
    %v577 = vmul.f32 %v556, %v575
    %v579 = vrot.slane %v577, 4
    %580 = vrot.lane.b32.xlu0 %v579, 32
    %v581 = vpop.permute.xlu0 %580
    %v582 = vsel %vm266, %v581, 0
    %584 = vmatprep.subr.mxu0 0.0
    %585 = vmatpush1.msra.mxu0 0.0
    %586 = vmatprep.subr.mxu0 0.0
    %587 = vmatpush1.msra.mxu0 0.0
    %588 = vmatprep.subr.mxu0 0.0
    %589 = vmatpush1.msra.mxu0 0.0
    %590 = vmatprep.subr.mxu0 0.0
    %591 = vmatpush1.msra.mxu0 0.0
    %592 = vmatprep.subr.mxu0 0.0
    %593 = vmatpush1.msra.mxu0 0.0
    %594 = vmatprep.subr.mxu0 0.0
    %595 = vmatpush1.msra.mxu0 0.0
    %596 = vmatprep.subr.mxu0 0.0
    %597 = vmatpush1.msra.mxu0 0.0
    %598 = vmatprep.subr.mxu0 0.0
    %599 = vmatpush1.msra.mxu0 0.0
    %600 = vmatprep.subr.mxu0 0.0
    %601 = vmatpush1.msra.mxu0 0.0
    %602 = vmatprep.subr.mxu0 0.0
    %603 = vmatpush1.msra.mxu0 0.0
    %604 = vmatprep.subr.mxu0 0.0
    %605 = vmatpush1.msra.mxu0 0.0
    %606 = vmatprep.subr.mxu0 0.0
    %607 = vmatpush1.msra.mxu0 0.0
    %608 = vmatprep.subr.mxu0 0.0
    %609 = vmatpush1.msra.mxu0 %v265
    %610 = vmatprep.subr.mxu0 0.0
    %611 = vmatpush1.msra.mxu0 %v264
    %612 = vmatprep.subr.mxu0 0.0
    %613 = vmatpush1.msra.mxu0 %v263
    %614 = vmatprep.subr.mxu0 0.0
    %615 = vmatpush1.msra.mxu0 %v262
    %616 = vmatprep.subr.mxu0 0.0
    %617 = vmatpush2.msra.mxu0 0.0
    %618 = vmatprep.subr.mxu0 0.0
    %619 = vmatpush2.msra.mxu0 0.0
    %620 = vmatprep.subr.mxu0 0.0
    %621 = vmatpush2.msra.mxu0 0.0
    %622 = vmatprep.subr.mxu0 0.0
    %623 = vmatpush2.msra.mxu0 0.0
    %624 = vmatprep.subr.mxu0 0.0
    %625 = vmatpush2.msra.mxu0 0.0
    %626 = vmatprep.subr.mxu0 0.0
    %627 = vmatpush2.msra.mxu0 0.0
    %628 = vmatprep.subr.mxu0 0.0
    %629 = vmatpush2.msra.mxu0 0.0
    %630 = vmatprep.subr.mxu0 0.0
    %631 = vmatpush2.msra.mxu0 0.0
    %632 = vmatprep.subr.mxu0 0.0
    %633 = vmatpush2.msra.mxu0 0.0
    %634 = vmatprep.subr.mxu0 0.0
    %635 = vmatpush2.msra.mxu0 0.0
    %636 = vmatprep.subr.mxu0 0.0
    %637 = vmatpush2.msra.mxu0 0.0
    %638 = vmatprep.subr.mxu0 0.0
    %639 = vmatpush2.msra.mxu0 0.0
    %640 = vmatprep.subr.mxu0 0.0
    %641 = vmatpush2.msra.mxu0 0.0
    %642 = vmatprep.subr.mxu0 0.0
    %643 = vmatpush2.msra.mxu0 0.0
    %644 = vmatprep.subr.mxu0 0.0
    %645 = vmatpush2.msra.mxu0 0.0
    %646 = vmatprep.subr.mxu0 0.0
    %647 = vmatpush2.msra.mxu0 0.0
    %648 = vmatprep.mubr.f32.mxu0 0.0
    %649 = vmatmul.mubr.f32.gmra.mxu0 %v582
    %v650 = vpop.f32.mrf.mxu0
    %v651 = vadd.f32 0.0, %v650
    %v652 = vpop.f32.mrf.mxu0
    %653 = vdwg.mxu0
    %v655 = vrot.slane %v651, 2
    %v657 = vadd.f32 %v254, %v655
    %v658 = vxor.u32 %v657, 2147483648
    %v659 = vmul.f32 %v658, 1.442695
    %v660 = vpow.pop %v659
    %v661 = vadd.f32 %v660, 1.0
    %v662 = vrcp.pop %v661
    %v663 = vmul.f32 1.0, %v662
    %v664 = vtanh.pop %v657
    %v666 = vrot.slane %v571, 6
    %v668 = vmul.f32 %v663, %v666
    %670 = vrot.lane.b32.xlu0 %v664, 64
    %v671 = vpop.permute.xlu0 %670
    %v673 = vmul.f32 %v663, %v671
    %675 = vrot.lane.b32.xlu0 %v673, 32
    %v676 = vpop.permute.xlu0 %675
    %v678 = vadd.f32 %v668, %v676
    %v679 = vtanh.pop %v678
    %681 = vrot.lane.b32.xlu0 %v679, 64
    %v682 = vpop.permute.xlu0 %681
    %v684 = vmul.f32 %v663, %v682
    %v686 = vrot.slane %v684, 6
    %687 = vrot.lane.b32.xlu0 %v686, 32
    %v688 = vpop.permute.xlu0 %687
    %v689 = vsel %vm266, %v688, 0
    %691 = vmatprep.subr.mxu0 0.0
    %692 = vmatpush1.msra.mxu0 0.0
    %693 = vmatprep.subr.mxu0 0.0
    %694 = vmatpush1.msra.mxu0 0.0
    %695 = vmatprep.subr.mxu0 0.0
    %696 = vmatpush1.msra.mxu0 0.0
    %697 = vmatprep.subr.mxu0 0.0
    %698 = vmatpush1.msra.mxu0 0.0
    %699 = vmatprep.subr.mxu0 0.0
    %700 = vmatpush1.msra.mxu0 0.0
    %701 = vmatprep.subr.mxu0 0.0
    %702 = vmatpush1.msra.mxu0 0.0
    %703 = vmatprep.subr.mxu0 0.0
    %704 = vmatpush1.msra.mxu0 0.0
    %705 = vmatprep.subr.mxu0 0.0
    %706 = vmatpush1.msra.mxu0 0.0
    %707 = vmatprep.subr.mxu0 0.0
    %708 = vmatpush1.msra.mxu0 0.0
    %709 = vmatprep.subr.mxu0 0.0
    %710 = vmatpush1.msra.mxu0 0.0
    %711 = vmatprep.subr.mxu0 0.0
    %712 = vmatpush1.msra.mxu0 0.0
    %713 = vmatprep.subr.mxu0 0.0
    %714 = vmatpush1.msra.mxu0 0.0
    %715 = vmatprep.subr.mxu0 0.0
    %716 = vmatpush1.msra.mxu0 %v265
    %717 = vmatprep.subr.mxu0 0.0
    %718 = vmatpush1.msra.mxu0 %v264
    %719 = vmatprep.subr.mxu0 0.0
    %720 = vmatpush1.msra.mxu0 %v263
    %721 = vmatprep.subr.mxu0 0.0
    %722 = vmatpush1.msra.mxu0 %v262
    %723 = vmatprep.subr.mxu0 0.0
    %724 = vmatpush2.msra.mxu0 0.0
    %725 = vmatprep.subr.mxu0 0.0
    %726 = vmatpush2.msra.mxu0 0.0
    %727 = vmatprep.subr.mxu0 0.0
    %728 = vmatpush2.msra.mxu0 0.0
    %729 = vmatprep.subr.mxu0 0.0
    %730 = vmatpush2.msra.mxu0 0.0
    %731 = vmatprep.subr.mxu0 0.0
    %732 = vmatpush2.msra.mxu0 0.0
    %733 = vmatprep.subr.mxu0 0.0
    %734 = vmatpush2.msra.mxu0 0.0
    %735 = vmatprep.subr.mxu0 0.0
    %736 = vmatpush2.msra.mxu0 0.0
    %737 = vmatprep.subr.mxu0 0.0
    %738 = vmatpush2.msra.mxu0 0.0
    %739 = vmatprep.subr.mxu0 0.0
    %740 = vmatpush2.msra.mxu0 0.0
    %741 = vmatprep.subr.mxu0 0.0
    %742 = vmatpush2.msra.mxu0 0.0
    %743 = vmatprep.subr.mxu0 0.0
    %744 = vmatpush2.msra.mxu0 0.0
    %745 = vmatprep.subr.mxu0 0.0
    %746 = vmatpush2.msra.mxu0 0.0
    %747 = vmatprep.subr.mxu0 0.0
    %748 = vmatpush2.msra.mxu0 0.0
    %749 = vmatprep.subr.mxu0 0.0
    %750 = vmatpush2.msra.mxu0 0.0
    %751 = vmatprep.subr.mxu0 0.0
    %752 = vmatpush2.msra.mxu0 0.0
    %753 = vmatprep.subr.mxu0 0.0
    %754 = vmatpush2.msra.mxu0 0.0
    %755 = vmatprep.mubr.f32.mxu0 0.0
    %756 = vmatmul.mubr.f32.gmra.mxu0 %v689
    %v757 = vpop.f32.mrf.mxu0
    %v758 = vadd.f32 0.0, %v757
    %v759 = vpop.f32.mrf.mxu0
    %760 = vdwg.mxu0
    %v761 = vadd.f32 %v259, %v758
    %v762 = vxor.u32 %v761, 2147483648
    %v763 = vmul.f32 %v762, 1.442695
    %v764 = vpow.pop %v763
    %v765 = vadd.f32 %v764, 1.0
    %v766 = vrcp.pop %v765
    %v767 = vmul.f32 1.0, %v766
    %v768 = vtanh.pop %v761
    %v770 = vrot.slane %v678, 6
    %v772 = vmul.f32 %v767, %v770
    %774 = vrot.lane.b32.xlu0 %v768, 64
    %v775 = vpop.permute.xlu0 %774
    %v777 = vmul.f32 %v767, %v775
    %779 = vrot.lane.b32.xlu0 %v777, 32
    %v780 = vpop.permute.xlu0 %779
    %v782 = vadd.f32 %v772, %v780
    %v783 = vtanh.pop %v782
    %785 = vrot.lane.b32.xlu0 %v783, 64
    %v786 = vpop.permute.xlu0 %785
    %v788 = vmul.f32 %v767, %v786
    %790 = vrot.lane.b32.xlu0 %v788, 32
    %v791 = vpop.permute.xlu0 %790
    %v792 = vsel %vm266, %v791, 0
    %794 = vmatprep.subr.mxu0 0.0
    %795 = vmatpush1.msra.mxu0 0.0
    %796 = vmatprep.subr.mxu0 0.0
    %797 = vmatpush1.msra.mxu0 0.0
    %798 = vmatprep.subr.mxu0 0.0
    %799 = vmatpush1.msra.mxu0 0.0
    %800 = vmatprep.subr.mxu0 0.0
    %801 = vmatpush1.msra.mxu0 0.0
    %802 = vmatprep.subr.mxu0 0.0
    %803 = vmatpush1.msra.mxu0 0.0
    %804 = vmatprep.subr.mxu0 0.0
    %805 = vmatpush1.msra.mxu0 0.0
    %806 = vmatprep.subr.mxu0 0.0
    %807 = vmatpush1.msra.mxu0 0.0
    %808 = vmatprep.subr.mxu0 0.0
    %809 = vmatpush1.msra.mxu0 0.0
    %810 = vmatprep.subr.mxu0 0.0
    %811 = vmatpush1.msra.mxu0 0.0
    %812 = vmatprep.subr.mxu0 0.0
    %813 = vmatpush1.msra.mxu0 0.0
    %814 = vmatprep.subr.mxu0 0.0
    %815 = vmatpush1.msra.mxu0 0.0
    %816 = vmatprep.subr.mxu0 0.0
    %817 = vmatpush1.msra.mxu0 0.0
    %818 = vmatprep.subr.mxu0 0.0
    %819 = vmatpush1.msra.mxu0 %v265
    %820 = vmatprep.subr.mxu0 0.0
    %821 = vmatpush1.msra.mxu0 %v264
    %822 = vmatprep.subr.mxu0 0.0
    %823 = vmatpush1.msra.mxu0 %v263
    %824 = vmatprep.subr.mxu0 0.0
    %825 = vmatpush1.msra.mxu0 %v262
    %826 = vmatprep.subr.mxu0 0.0
    %827 = vmatpush2.msra.mxu0 0.0
    %828 = vmatprep.subr.mxu0 0.0
    %829 = vmatpush2.msra.mxu0 0.0
    %830 = vmatprep.subr.mxu0 0.0
    %831 = vmatpush2.msra.mxu0 0.0
    %832 = vmatprep.subr.mxu0 0.0
    %833 = vmatpush2.msra.mxu0 0.0
    %834 = vmatprep.subr.mxu0 0.0
    %835 = vmatpush2.msra.mxu0 0.0
    %836 = vmatprep.subr.mxu0 0.0
    %837 = vmatpush2.msra.mxu0 0.0
    %838 = vmatprep.subr.mxu0 0.0
    %839 = vmatpush2.msra.mxu0 0.0
    %840 = vmatprep.subr.mxu0 0.0
    %841 = vmatpush2.msra.mxu0 0.0
    %842 = vmatprep.subr.mxu0 0.0
    %843 = vmatpush2.msra.mxu0 0.0
    %844 = vmatprep.subr.mxu0 0.0
    %845 = vmatpush2.msra.mxu0 0.0
    %846 = vmatprep.subr.mxu0 0.0
    %847 = vmatpush2.msra.mxu0 0.0
    %848 = vmatprep.subr.mxu0 0.0
    %849 = vmatpush2.msra.mxu0 0.0
    %850 = vmatprep.subr.mxu0 0.0
    %851 = vmatpush2.msra.mxu0 0.0
    %852 = vmatprep.subr.mxu0 0.0
    %853 = vmatpush2.msra.mxu0 0.0
    %854 = vmatprep.subr.mxu0 0.0
    %855 = vmatpush2.msra.mxu0 0.0
    %856 = vmatprep.subr.mxu0 0.0
    %857 = vmatpush2.msra.mxu0 0.0
    %858 = vmatprep.mubr.f32.mxu0 0.0
    %859 = vmatmul.mubr.f32.gmra.mxu0 %v792
    %v860 = vpop.f32.mrf.mxu0
    %v861 = vadd.f32 0.0, %v860
    %v862 = vpop.f32.mrf.mxu0
    %863 = vdwg.mxu0
    %v865 = vrot.slane %v861, 6
    %v867 = vadd.f32 %v259, %v865
    %v868 = vxor.u32 %v867, 2147483648
    %v869 = vmul.f32 %v868, 1.442695
    %v870 = vpow.pop %v869
    %v871 = vadd.f32 %v870, 1.0
    %v872 = vrcp.pop %v871
    %v873 = vmul.f32 1.0, %v872
    %v874 = vtanh.pop %v867
    %v876 = vrot.slane %v782, 6
    %v878 = vmul.f32 %v873, %v876
    %880 = vrot.lane.b32.xlu0 %v874, 64
    %v881 = vpop.permute.xlu0 %880
    %v883 = vmul.f32 %v873, %v881
    %885 = vrot.lane.b32.xlu0 %v883, 32
    %v886 = vpop.permute.xlu0 %885
    %v888 = vadd.f32 %v878, %v886
    %v889 = vtanh.pop %v888
    %891 = vrot.lane.b32.xlu0 %v889, 64
    %v892 = vpop.permute.xlu0 %891
    %v894 = vmul.f32 %v873, %v892
    %v896 = vrot.slane %v894, 2
    %897 = vrot.lane.b32.xlu0 %v896, 32
    %v898 = vpop.permute.xlu0 %897
    %v899 = vsel %vm266, %v898, 0
    %901 = vmatprep.subr.mxu0 0.0
    %902 = vmatpush1.msra.mxu0 0.0
    %903 = vmatprep.subr.mxu0 0.0
    %904 = vmatpush1.msra.mxu0 0.0
    %905 = vmatprep.subr.mxu0 0.0
    %906 = vmatpush1.msra.mxu0 0.0
    %907 = vmatprep.subr.mxu0 0.0
    %908 = vmatpush1.msra.mxu0 0.0
    %909 = vmatprep.subr.mxu0 0.0
    %910 = vmatpush1.msra.mxu0 0.0
    %911 = vmatprep.subr.mxu0 0.0
    %912 = vmatpush1.msra.mxu0 0.0
    %913 = vmatprep.subr.mxu0 0.0
    %914 = vmatpush1.msra.mxu0 0.0
    %915 = vmatprep.subr.mxu0 0.0
    %916 = vmatpush1.msra.mxu0 0.0
    %917 = vmatprep.subr.mxu0 0.0
    %918 = vmatpush1.msra.mxu0 0.0
    %919 = vmatprep.subr.mxu0 0.0
    %920 = vmatpush1.msra.mxu0 0.0
    %921 = vmatprep.subr.mxu0 0.0
    %922 = vmatpush1.msra.mxu0 0.0
    %923 = vmatprep.subr.mxu0 0.0
    %924 = vmatpush1.msra.mxu0 0.0
    %925 = vmatprep.subr.mxu0 0.0
    %926 = vmatpush1.msra.mxu0 %v265
    %927 = vmatprep.subr.mxu0 0.0
    %928 = vmatpush1.msra.mxu0 %v264
    %929 = vmatprep.subr.mxu0 0.0
    %930 = vmatpush1.msra.mxu0 %v263
    %931 = vmatprep.subr.mxu0 0.0
    %932 = vmatpush1.msra.mxu0 %v262
    %933 = vmatprep.subr.mxu0 0.0
    %934 = vmatpush2.msra.mxu0 0.0
    %935 = vmatprep.subr.mxu0 0.0
    %936 = vmatpush2.msra.mxu0 0.0
    %937 = vmatprep.subr.mxu0 0.0
    %938 = vmatpush2.msra.mxu0 0.0
    %939 = vmatprep.subr.mxu0 0.0
    %940 = vmatpush2.msra.mxu0 0.0
    %941 = vmatprep.subr.mxu0 0.0
    %942 = vmatpush2.msra.mxu0 0.0
    %943 = vmatprep.subr.mxu0 0.0
    %944 = vmatpush2.msra.mxu0 0.0
    %945 = vmatprep.subr.mxu0 0.0
    %946 = vmatpush2.msra.mxu0 0.0
    %947 = vmatprep.subr.mxu0 0.0
    %948 = vmatpush2.msra.mxu0 0.0
    %949 = vmatprep.subr.mxu0 0.0
    %950 = vmatpush2.msra.mxu0 0.0
    %951 = vmatprep.subr.mxu0 0.0
    %952 = vmatpush2.msra.mxu0 0.0
    %953 = vmatprep.subr.mxu0 0.0
    %954 = vmatpush2.msra.mxu0 0.0
    %955 = vmatprep.subr.mxu0 0.0
    %956 = vmatpush2.msra.mxu0 0.0
    %957 = vmatprep.subr.mxu0 0.0
    %958 = vmatpush2.msra.mxu0 0.0
    %959 = vmatprep.subr.mxu0 0.0
    %960 = vmatpush2.msra.mxu0 0.0
    %961 = vmatprep.subr.mxu0 0.0
    %962 = vmatpush2.msra.mxu0 0.0
    %963 = vmatprep.subr.mxu0 0.0
    %964 = vmatpush2.msra.mxu0 0.0
    %965 = vmatprep.mubr.f32.mxu0 0.0
    %966 = vmatmul.mubr.f32.gmra.mxu0 %v899
    %v967 = vpop.f32.mrf.mxu0
    %v968 = vadd.f32 0.0, %v967
    %v969 = vpop.f32.mrf.mxu0
    %970 = vdwg.mxu0
    %v972 = vrot.slane %v968, 4
    %v974 = vadd.f32 %v259, %v972
    %v975 = vxor.u32 %v974, 2147483648
    %v976 = vmul.f32 %v975, 1.442695
    %v977 = vpow.pop %v976
    %v978 = vadd.f32 %v977, 1.0
    %v979 = vrcp.pop %v978
    %v980 = vmul.f32 1.0, %v979
    %v981 = vtanh.pop %v974
    %v983 = vrot.slane %v888, 6
    %v985 = vmul.f32 %v980, %v983
    %987 = vrot.lane.b32.xlu0 %v981, 64
    %v988 = vpop.permute.xlu0 %987
    %v990 = vmul.f32 %v980, %v988
    %992 = vrot.lane.b32.xlu0 %v990, 32
    %v993 = vpop.permute.xlu0 %992
    %v995 = vadd.f32 %v985, %v993
    %v996 = vtanh.pop %v995
    %998 = vrot.lane.b32.xlu0 %v996, 64
    %v999 = vpop.permute.xlu0 %998
    %v1001 = vmul.f32 %v980, %v999
    %v1003 = vrot.slane %v1001, 4
    %1004 = vrot.lane.b32.xlu0 %v1003, 32
    %v1005 = vpop.permute.xlu0 %1004
    %v1006 = vsel %vm266, %v1005, 0
    %1008 = vmatprep.subr.mxu0 0.0
    %1009 = vmatpush1.msra.mxu0 0.0
    %1010 = vmatprep.subr.mxu0 0.0
    %1011 = vmatpush1.msra.mxu0 0.0
    %1012 = vmatprep.subr.mxu0 0.0
    %1013 = vmatpush1.msra.mxu0 0.0
    %1014 = vmatprep.subr.mxu0 0.0
    %1015 = vmatpush1.msra.mxu0 0.0
    %1016 = vmatprep.subr.mxu0 0.0
    %1017 = vmatpush1.msra.mxu0 0.0
    %1018 = vmatprep.subr.mxu0 0.0
    %1019 = vmatpush1.msra.mxu0 0.0
    %1020 = vmatprep.subr.mxu0 0.0
    %1021 = vmatpush1.msra.mxu0 0.0
    %1022 = vmatprep.subr.mxu0 0.0
    %1023 = vmatpush1.msra.mxu0 0.0
    %1024 = vmatprep.subr.mxu0 0.0
    %1025 = vmatpush1.msra.mxu0 0.0
    %1026 = vmatprep.subr.mxu0 0.0
    %1027 = vmatpush1.msra.mxu0 0.0
    %1028 = vmatprep.subr.mxu0 0.0
    %1029 = vmatpush1.msra.mxu0 0.0
    %1030 = vmatprep.subr.mxu0 0.0
    %1031 = vmatpush1.msra.mxu0 0.0
    %1032 = vmatprep.subr.mxu0 0.0
    %1033 = vmatpush1.msra.mxu0 %v265
    %1034 = vmatprep.subr.mxu0 0.0
    %1035 = vmatpush1.msra.mxu0 %v264
    %1036 = vmatprep.subr.mxu0 0.0
    %1037 = vmatpush1.msra.mxu0 %v263
    %1038 = vmatprep.subr.mxu0 0.0
    %1039 = vmatpush1.msra.mxu0 %v262
    %1040 = vmatprep.subr.mxu0 0.0
    %1041 = vmatpush2.msra.mxu0 0.0
    %1042 = vmatprep.subr.mxu0 0.0
    %1043 = vmatpush2.msra.mxu0 0.0
    %1044 = vmatprep.subr.mxu0 0.0
    %1045 = vmatpush2.msra.mxu0 0.0
    %1046 = vmatprep.subr.mxu0 0.0
    %1047 = vmatpush2.msra.mxu0 0.0
    %1048 = vmatprep.subr.mxu0 0.0
    %1049 = vmatpush2.msra.mxu0 0.0
    %1050 = vmatprep.subr.mxu0 0.0
    %1051 = vmatpush2.msra.mxu0 0.0
    %1052 = vmatprep.subr.mxu0 0.0
    %1053 = vmatpush2.msra.mxu0 0.0
    %1054 = vmatprep.subr.mxu0 0.0
    %1055 = vmatpush2.msra.mxu0 0.0
    %1056 = vmatprep.subr.mxu0 0.0
    %1057 = vmatpush2.msra.mxu0 0.0
    %1058 = vmatprep.subr.mxu0 0.0
    %1059 = vmatpush2.msra.mxu0 0.0
    %1060 = vmatprep.subr.mxu0 0.0
    %1061 = vmatpush2.msra.mxu0 0.0
    %1062 = vmatprep.subr.mxu0 0.0
    %1063 = vmatpush2.msra.mxu0 0.0
    %1064 = vmatprep.subr.mxu0 0.0
    %1065 = vmatpush2.msra.mxu0 0.0
    %1066 = vmatprep.subr.mxu0 0.0
    %1067 = vmatpush2.msra.mxu0 0.0
    %1068 = vmatprep.subr.mxu0 0.0
    %1069 = vmatpush2.msra.mxu0 0.0
    %1070 = vmatprep.subr.mxu0 0.0
    %1071 = vmatpush2.msra.mxu0 0.0
    %1072 = vmatprep.mubr.f32.mxu0 0.0
    %1073 = vmatmul.mubr.f32.gmra.mxu0 %v1006
    %v1074 = vpop.f32.mrf.mxu0
    %v1075 = vadd.f32 0.0, %v1074
    %v1076 = vpop.f32.mrf.mxu0
    %1077 = vdwg.mxu0
    %v1079 = vrot.slane %v1075, 2
    %v1081 = vadd.f32 %v259, %v1079
    %v1082 = vxor.u32 %v1081, 2147483648
    %v1083 = vmul.f32 %v1082, 1.442695
    %v1084 = vpow.pop %v1083
    %v1085 = vadd.f32 %v1084, 1.0
    %v1086 = vrcp.pop %v1085
    %v1087 = vmul.f32 1.0, %v1086
    %v1088 = vtanh.pop %v1081
    %v1090 = vrot.slane %v995, 6
    %v1092 = vmul.f32 %v1087, %v1090
    %1094 = vrot.lane.b32.xlu0 %v1088, 64
    %v1095 = vpop.permute.xlu0 %1094
    %v1097 = vmul.f32 %v1087, %v1095
    %1099 = vrot.lane.b32.xlu0 %v1097, 32
    %v1100 = vpop.permute.xlu0 %1099
    %v1102 = vadd.f32 %v1092, %v1100
    %v1103 = vtanh.pop %v1102
    %1105 = vrot.lane.b32.xlu0 %v1103, 64
    %v1106 = vpop.permute.xlu0 %1105
    %v1108 = vmul.f32 %v1087, %v1106
    %v1109 = vsel %vm162, %v364, %v470
    %v1110 = vsel %vm164, %v1109, %v577
    %v1111 = vsel %vm166, %v1110, %v684
    %v1112 = vsel %vm162, %v788, %v894
    %v1113 = vsel %vm164, %v1112, %v1001
    %v1114 = vsel %vm166, %v1113, %v1108
    %v1115 = vld [vmem:[#allocation9] sm:$0xff]
    %v1116 = vld [vmem:[#allocation9 + $0x8] sm:$0xff]
    %v1117 = vld [vmem:[#allocation9 + $0x10] sm:$0xff]
    %v1118 = vld [vmem:[#allocation9 + $0x18] sm:$0xff]
    %v1119 = vld [vmem:[%s6] sm:$0x1]
    %v1121 = vlaneseq
    %v1122 = vshrl.u32 %v1121, 7
    %v1123 = vsub.s32 0, %v1122
    %v1124 = vrot.slane %v1119, %v1123
    %1128 = vrot.lane.b32.xlu0 %v1111, 32
    %v1129 = vpop.permute.xlu0 %1128
    %1130 = vrot.lane.b32.xlu0 %v1114, 32
    %v1131 = vpop.permute.xlu0 %1130
    %v1132 = vsel %vm266, %v1129, 0
    %v1134 = vsel %vm266, %v1131, 0
    %1136 = vmatprep.subr.mxu0 0.0
    %1137 = vmatpush1.msra.mxu0 0.0
    %1138 = vmatprep.subr.mxu0 0.0
    %1139 = vmatpush1.msra.mxu0 0.0
    %1140 = vmatprep.subr.mxu0 0.0
    %1141 = vmatpush1.msra.mxu0 0.0
    %1142 = vmatprep.subr.mxu0 0.0
    %1143 = vmatpush1.msra.mxu0 0.0
    %1144 = vmatprep.subr.mxu0 0.0
    %1145 = vmatpush1.msra.mxu0 0.0
    %1146 = vmatprep.subr.mxu0 0.0
    %1147 = vmatpush1.msra.mxu0 0.0
    %1148 = vmatprep.subr.mxu0 0.0
    %1149 = vmatpush1.msra.mxu0 0.0
    %1150 = vmatprep.subr.mxu0 0.0
    %1151 = vmatpush1.msra.mxu0 0.0
    %1152 = vmatprep.subr.mxu0 0.0
    %1153 = vmatpush1.msra.mxu0 0.0
    %1154 = vmatprep.subr.mxu0 0.0
    %1155 = vmatpush1.msra.mxu0 0.0
    %1156 = vmatprep.subr.mxu0 0.0
    %1157 = vmatpush1.msra.mxu0 0.0
    %1158 = vmatprep.subr.mxu0 0.0
    %1159 = vmatpush1.msra.mxu0 0.0
    %1160 = vmatprep.subr.mxu0 0.0
    %1161 = vmatpush1.msra.mxu0 %v1118
    %1162 = vmatprep.subr.mxu0 0.0
    %1163 = vmatpush1.msra.mxu0 %v1117
    %1164 = vmatprep.subr.mxu0 0.0
    %1165 = vmatpush1.msra.mxu0 %v1116
    %1166 = vmatprep.subr.mxu0 0.0
    %1167 = vmatpush1.msra.mxu0 %v1115
    %1168 = vmatprep.subr.mxu0 0.0
    %1169 = vmatpush2.msra.mxu0 0.0
    %1170 = vmatprep.subr.mxu0 0.0
    %1171 = vmatpush2.msra.mxu0 0.0
    %1172 = vmatprep.subr.mxu0 0.0
    %1173 = vmatpush2.msra.mxu0 0.0
    %1174 = vmatprep.subr.mxu0 0.0
    %1175 = vmatpush2.msra.mxu0 0.0
    %1176 = vmatprep.subr.mxu0 0.0
    %1177 = vmatpush2.msra.mxu0 0.0
    %1178 = vmatprep.subr.mxu0 0.0
    %1179 = vmatpush2.msra.mxu0 0.0
    %1180 = vmatprep.subr.mxu0 0.0
    %1181 = vmatpush2.msra.mxu0 0.0
    %1182 = vmatprep.subr.mxu0 0.0
    %1183 = vmatpush2.msra.mxu0 0.0
    %1184 = vmatprep.subr.mxu0 0.0
    %1185 = vmatpush2.msra.mxu0 0.0
    %1186 = vmatprep.subr.mxu0 0.0
    %1187 = vmatpush2.msra.mxu0 0.0
    %1188 = vmatprep.subr.mxu0 0.0
    %1189 = vmatpush2.msra.mxu0 0.0
    %1190 = vmatprep.subr.mxu0 0.0
    %1191 = vmatpush2.msra.mxu0 0.0
    %1192 = vmatprep.subr.mxu0 0.0
    %1193 = vmatpush2.msra.mxu0 0.0
    %1194 = vmatprep.subr.mxu0 0.0
    %1195 = vmatpush2.msra.mxu0 0.0
    %1196 = vmatprep.subr.mxu0 0.0
    %1197 = vmatpush2.msra.mxu0 0.0
    %1198 = vmatprep.subr.mxu0 0.0
    %1199 = vmatpush2.msra.mxu0 0.0
    %1200 = vmatprep.mubr.f32.mxu0 0.0
    %1201 = vmatmul.mubr.f32.gmra.mxu0 %v1132
    %v1202 = vpop.f32.mrf.mxu0
    %v1203 = vadd.f32 %v1124, %v1202
    %v1204 = vpop.f32.mrf.mxu0
    %1205 = vmatprep.mubr.f32.mxu0 0.0
    %1206 = vmatmul.mubr.f32.gmra.mxu0 %v1134
    %v1207 = vpop.f32.mrf.mxu0
    %v1208 = vadd.f32 %v1124, %v1207
    %v1209 = vpop.f32.mrf.mxu0
    %1210 = vdwg.mxu0
    %v1211 = vld [vmem:[#allocation11] sm:$0xff]
    %v1212 = vld [vmem:[#allocation11 + $0x8] sm:$0xff]
    %v1213 = vld [vmem:[#allocation11 + $0x10] sm:$0xff]
    %v1214 = vld [vmem:[#allocation11 + $0x18] sm:$0xff]
    %1215 = vmatprep.subr.mxu0 0.0
    %1216 = vmatpush1.msra.mxu0 0.0
    %1217 = vmatprep.subr.mxu0 0.0
    %1218 = vmatpush1.msra.mxu0 0.0
    %1219 = vmatprep.subr.mxu0 0.0
    %1220 = vmatpush1.msra.mxu0 0.0
    %1221 = vmatprep.subr.mxu0 0.0
    %1222 = vmatpush1.msra.mxu0 0.0
    %1223 = vmatprep.subr.mxu0 0.0
    %1224 = vmatpush1.msra.mxu0 0.0
    %1225 = vmatprep.subr.mxu0 0.0
    %1226 = vmatpush1.msra.mxu0 0.0
    %1227 = vmatprep.subr.mxu0 0.0
    %1228 = vmatpush1.msra.mxu0 0.0
    %1229 = vmatprep.subr.mxu0 0.0
    %1230 = vmatpush1.msra.mxu0 0.0
    %1231 = vmatprep.subr.mxu0 0.0
    %1232 = vmatpush1.msra.mxu0 0.0
    %1233 = vmatprep.subr.mxu0 0.0
    %1234 = vmatpush1.msra.mxu0 0.0
    %1235 = vmatprep.subr.mxu0 0.0
    %1236 = vmatpush1.msra.mxu0 0.0
    %1237 = vmatprep.subr.mxu0 0.0
    %1238 = vmatpush1.msra.mxu0 0.0
    %1239 = vmatprep.subr.mxu0 0.0
    %1240 = vmatpush1.msra.mxu0 %v1214
    %1241 = vmatprep.subr.mxu0 0.0
    %1242 = vmatpush1.msra.mxu0 %v1213
    %1243 = vmatprep.subr.mxu0 0.0
    %1244 = vmatpush1.msra.mxu0 %v1212
    %1245 = vmatprep.subr.mxu0 0.0
    %1246 = vmatpush1.msra.mxu0 %v1211
    %1247 = vmatprep.subr.mxu0 0.0
    %1248 = vmatpush2.msra.mxu0 0.0
    %1249 = vmatprep.subr.mxu0 0.0
    %1250 = vmatpush2.msra.mxu0 0.0
    %1251 = vmatprep.subr.mxu0 0.0
    %1252 = vmatpush2.msra.mxu0 0.0
    %1253 = vmatprep.subr.mxu0 0.0
    %1254 = vmatpush2.msra.mxu0 0.0
    %1255 = vmatprep.subr.mxu0 0.0
    %1256 = vmatpush2.msra.mxu0 0.0
    %1257 = vmatprep.subr.mxu0 0.0
    %1258 = vmatpush2.msra.mxu0 0.0
    %1259 = vmatprep.subr.mxu0 0.0
    %1260 = vmatpush2.msra.mxu0 0.0
    %1261 = vmatprep.subr.mxu0 0.0
    %1262 = vmatpush2.msra.mxu0 0.0
    %1263 = vmatprep.subr.mxu0 0.0
    %1264 = vmatpush2.msra.mxu0 0.0
    %1265 = vmatprep.subr.mxu0 0.0
    %1266 = vmatpush2.msra.mxu0 0.0
    %1267 = vmatprep.subr.mxu0 0.0
    %1268 = vmatpush2.msra.mxu0 0.0
    %1269 = vmatprep.subr.mxu0 0.0
    %1270 = vmatpush2.msra.mxu0 0.0
    %1271 = vmatprep.subr.mxu0 0.0
    %1272 = vmatpush2.msra.mxu0 0.0
    %1273 = vmatprep.subr.mxu0 0.0
    %1274 = vmatpush2.msra.mxu0 0.0
    %1275 = vmatprep.subr.mxu0 0.0
    %1276 = vmatpush2.msra.mxu0 0.0
    %1277 = vmatprep.subr.mxu0 0.0
    %1278 = vmatpush2.msra.mxu0 0.0
    %1279 = vmatprep.mubr.f32.mxu0 0.0
    %1280 = vmatmul.mubr.f32.gmra.mxu0 %v268
    %v1281 = vpop.f32.mrf.mxu0
    %v1282 = vadd.f32 0.0, %v1281
    %v1283 = vpop.f32.mrf.mxu0
    %1284 = vdwg.mxu0
    %v1285 = vadd.f32 %v1203, %v1282
    %v1286 = vxor.u32 %v1285, 2147483648
    %v1287 = vmul.f32 %v1286, 1.442695
    %v1288 = vpow.pop %v1287
    %v1289 = vadd.f32 %v1288, 1.0
    %v1290 = vrcp.pop %v1289
    %v1291 = vmul.f32 1.0, %v1290
    %v1292 = vtanh.pop %v1285
    %v1293 = vmul.f32 %v1291, 0.0
    %1295 = vrot.lane.b32.xlu0 %v1292, 64
    %v1296 = vpop.permute.xlu0 %1295
    %v1298 = vmul.f32 %v1291, %v1296
    %1300 = vrot.lane.b32.xlu0 %v1298, 32
    %v1301 = vpop.permute.xlu0 %1300
    %v1303 = vadd.f32 %v1293, %v1301
    %v1304 = vtanh.pop %v1303
    %1306 = vrot.lane.b32.xlu0 %v1304, 64
    %v1307 = vpop.permute.xlu0 %1306
    %v1309 = vmul.f32 %v1291, %v1307
    %1311 = vrot.lane.b32.xlu0 %v1309, 32
    %v1312 = vpop.permute.xlu0 %1311
    %v1313 = vsel %vm266, %v1312, 0
    %1315 = vmatprep.subr.mxu0 0.0
    %1316 = vmatpush1.msra.mxu0 0.0
    %1317 = vmatprep.subr.mxu0 0.0
    %1318 = vmatpush1.msra.mxu0 0.0
    %1319 = vmatprep.subr.mxu0 0.0
    %1320 = vmatpush1.msra.mxu0 0.0
    %1321 = vmatprep.subr.mxu0 0.0
    %1322 = vmatpush1.msra.mxu0 0.0
    %1323 = vmatprep.subr.mxu0 0.0
    %1324 = vmatpush1.msra.mxu0 0.0
    %1325 = vmatprep.subr.mxu0 0.0
    %1326 = vmatpush1.msra.mxu0 0.0
    %1327 = vmatprep.subr.mxu0 0.0
    %1328 = vmatpush1.msra.mxu0 0.0
    %1329 = vmatprep.subr.mxu0 0.0
    %1330 = vmatpush1.msra.mxu0 0.0
    %1331 = vmatprep.subr.mxu0 0.0
    %1332 = vmatpush1.msra.mxu0 0.0
    %1333 = vmatprep.subr.mxu0 0.0
    %1334 = vmatpush1.msra.mxu0 0.0
    %1335 = vmatprep.subr.mxu0 0.0
    %1336 = vmatpush1.msra.mxu0 0.0
    %1337 = vmatprep.subr.mxu0 0.0
    %1338 = vmatpush1.msra.mxu0 0.0
    %1339 = vmatprep.subr.mxu0 0.0
    %1340 = vmatpush1.msra.mxu0 %v1214
    %1341 = vmatprep.subr.mxu0 0.0
    %1342 = vmatpush1.msra.mxu0 %v1213
    %1343 = vmatprep.subr.mxu0 0.0
    %1344 = vmatpush1.msra.mxu0 %v1212
    %1345 = vmatprep.subr.mxu0 0.0
    %1346 = vmatpush1.msra.mxu0 %v1211
    %1347 = vmatprep.subr.mxu0 0.0
    %1348 = vmatpush2.msra.mxu0 0.0
    %1349 = vmatprep.subr.mxu0 0.0
    %1350 = vmatpush2.msra.mxu0 0.0
    %1351 = vmatprep.subr.mxu0 0.0
    %1352 = vmatpush2.msra.mxu0 0.0
    %1353 = vmatprep.subr.mxu0 0.0
    %1354 = vmatpush2.msra.mxu0 0.0
    %1355 = vmatprep.subr.mxu0 0.0
    %1356 = vmatpush2.msra.mxu0 0.0
    %1357 = vmatprep.subr.mxu0 0.0
    %1358 = vmatpush2.msra.mxu0 0.0
    %1359 = vmatprep.subr.mxu0 0.0
    %1360 = vmatpush2.msra.mxu0 0.0
    %1361 = vmatprep.subr.mxu0 0.0
    %1362 = vmatpush2.msra.mxu0 0.0
    %1363 = vmatprep.subr.mxu0 0.0
    %1364 = vmatpush2.msra.mxu0 0.0
    %1365 = vmatprep.subr.mxu0 0.0
    %1366 = vmatpush2.msra.mxu0 0.0
    %1367 = vmatprep.subr.mxu0 0.0
    %1368 = vmatpush2.msra.mxu0 0.0
    %1369 = vmatprep.subr.mxu0 0.0
    %1370 = vmatpush2.msra.mxu0 0.0
    %1371 = vmatprep.subr.mxu0 0.0
    %1372 = vmatpush2.msra.mxu0 0.0
    %1373 = vmatprep.subr.mxu0 0.0
    %1374 = vmatpush2.msra.mxu0 0.0
    %1375 = vmatprep.subr.mxu0 0.0
    %1376 = vmatpush2.msra.mxu0 0.0
    %1377 = vmatprep.subr.mxu0 0.0
    %1378 = vmatpush2.msra.mxu0 0.0
    %1379 = vmatprep.mubr.f32.mxu0 0.0
    %1380 = vmatmul.mubr.f32.gmra.mxu0 %v1313
    %v1381 = vpop.f32.mrf.mxu0
    %v1382 = vadd.f32 0.0, %v1381
    %v1383 = vpop.f32.mrf.mxu0
    %1384 = vdwg.mxu0
    %v1386 = vrot.slane %v1382, 6
    %v1388 = vadd.f32 %v1203, %v1386
    %v1389 = vxor.u32 %v1388, 2147483648
    %v1390 = vmul.f32 %v1389, 1.442695
    %v1391 = vpow.pop %v1390
    %v1392 = vadd.f32 %v1391, 1.0
    %v1393 = vrcp.pop %v1392
    %v1394 = vmul.f32 1.0, %v1393
    %v1395 = vtanh.pop %v1388
    %v1397 = vrot.slane %v1303, 6
    %v1399 = vmul.f32 %v1394, %v1397
    %1401 = vrot.lane.b32.xlu0 %v1395, 64
    %v1402 = vpop.permute.xlu0 %1401
    %v1404 = vmul.f32 %v1394, %v1402
    %1406 = vrot.lane.b32.xlu0 %v1404, 32
    %v1407 = vpop.permute.xlu0 %1406
    %v1409 = vadd.f32 %v1399, %v1407
    %v1410 = vtanh.pop %v1409
    %1412 = vrot.lane.b32.xlu0 %v1410, 64
    %v1413 = vpop.permute.xlu0 %1412
    %v1415 = vmul.f32 %v1394, %v1413
    %v1417 = vrot.slane %v1415, 2
    %1418 = vrot.lane.b32.xlu0 %v1417, 32
    %v1419 = vpop.permute.xlu0 %1418
    %v1420 = vsel %vm266, %v1419, 0
    %1422 = vmatprep.subr.mxu0 0.0
    %1423 = vmatpush1.msra.mxu0 0.0
    %1424 = vmatprep.subr.mxu0 0.0
    %1425 = vmatpush1.msra.mxu0 0.0
    %1426 = vmatprep.subr.mxu0 0.0
    %1427 = vmatpush1.msra.mxu0 0.0
    %1428 = vmatprep.subr.mxu0 0.0
    %1429 = vmatpush1.msra.mxu0 0.0
    %1430 = vmatprep.subr.mxu0 0.0
    %1431 = vmatpush1.msra.mxu0 0.0
    %1432 = vmatprep.subr.mxu0 0.0
    %1433 = vmatpush1.msra.mxu0 0.0
    %1434 = vmatprep.subr.mxu0 0.0
    %1435 = vmatpush1.msra.mxu0 0.0
    %1436 = vmatprep.subr.mxu0 0.0
    %1437 = vmatpush1.msra.mxu0 0.0
    %1438 = vmatprep.subr.mxu0 0.0
    %1439 = vmatpush1.msra.mxu0 0.0
    %1440 = vmatprep.subr.mxu0 0.0
    %1441 = vmatpush1.msra.mxu0 0.0
    %1442 = vmatprep.subr.mxu0 0.0
    %1443 = vmatpush1.msra.mxu0 0.0
    %1444 = vmatprep.subr.mxu0 0.0
    %1445 = vmatpush1.msra.mxu0 0.0
    %1446 = vmatprep.subr.mxu0 0.0
    %1447 = vmatpush1.msra.mxu0 %v1214
    %1448 = vmatprep.subr.mxu0 0.0
    %1449 = vmatpush1.msra.mxu0 %v1213
    %1450 = vmatprep.subr.mxu0 0.0
    %1451 = vmatpush1.msra.mxu0 %v1212
    %1452 = vmatprep.subr.mxu0 0.0
    %1453 = vmatpush1.msra.mxu0 %v1211
    %1454 = vmatprep.subr.mxu0 0.0
    %1455 = vmatpush2.msra.mxu0 0.0
    %1456 = vmatprep.subr.mxu0 0.0
    %1457 = vmatpush2.msra.mxu0 0.0
    %1458 = vmatprep.subr.mxu0 0.0
    %1459 = vmatpush2.msra.mxu0 0.0
    %1460 = vmatprep.subr.mxu0 0.0
    %1461 = vmatpush2.msra.mxu0 0.0
    %1462 = vmatprep.subr.mxu0 0.0
    %1463 = vmatpush2.msra.mxu0 0.0
    %1464 = vmatprep.subr.mxu0 0.0
    %1465 = vmatpush2.msra.mxu0 0.0
    %1466 = vmatprep.subr.mxu0 0.0
    %1467 = vmatpush2.msra.mxu0 0.0
    %1468 = vmatprep.subr.mxu0 0.0
    %1469 = vmatpush2.msra.mxu0 0.0
    %1470 = vmatprep.subr.mxu0 0.0
    %1471 = vmatpush2.msra.mxu0 0.0
    %1472 = vmatprep.subr.mxu0 0.0
    %1473 = vmatpush2.msra.mxu0 0.0
    %1474 = vmatprep.subr.mxu0 0.0
    %1475 = vmatpush2.msra.mxu0 0.0
    %1476 = vmatprep.subr.mxu0 0.0
    %1477 = vmatpush2.msra.mxu0 0.0
    %1478 = vmatprep.subr.mxu0 0.0
    %1479 = vmatpush2.msra.mxu0 0.0
    %1480 = vmatprep.subr.mxu0 0.0
    %1481 = vmatpush2.msra.mxu0 0.0
    %1482 = vmatprep.subr.mxu0 0.0
    %1483 = vmatpush2.msra.mxu0 0.0
    %1484 = vmatprep.subr.mxu0 0.0
    %1485 = vmatpush2.msra.mxu0 0.0
    %1486 = vmatprep.mubr.f32.mxu0 0.0
    %1487 = vmatmul.mubr.f32.gmra.mxu0 %v1420
    %v1488 = vpop.f32.mrf.mxu0
    %v1489 = vadd.f32 0.0, %v1488
    %v1490 = vpop.f32.mrf.mxu0
    %1491 = vdwg.mxu0
    %v1493 = vrot.slane %v1489, 4
    %v1495 = vadd.f32 %v1203, %v1493
    %v1496 = vxor.u32 %v1495, 2147483648
    %v1497 = vmul.f32 %v1496, 1.442695
    %v1498 = vpow.pop %v1497
    %v1499 = vadd.f32 %v1498, 1.0
    %v1500 = vrcp.pop %v1499
    %v1501 = vmul.f32 1.0, %v1500
    %v1502 = vtanh.pop %v1495
    %v1504 = vrot.slane %v1409, 6
    %v1506 = vmul.f32 %v1501, %v1504
    %1508 = vrot.lane.b32.xlu0 %v1502, 64
    %v1509 = vpop.permute.xlu0 %1508
    %v1511 = vmul.f32 %v1501, %v1509
    %1513 = vrot.lane.b32.xlu0 %v1511, 32
    %v1514 = vpop.permute.xlu0 %1513
    %v1516 = vadd.f32 %v1506, %v1514
    %v1517 = vtanh.pop %v1516
    %1519 = vrot.lane.b32.xlu0 %v1517, 64
    %v1520 = vpop.permute.xlu0 %1519
    %v1522 = vmul.f32 %v1501, %v1520
    %v1524 = vrot.slane %v1522, 4
    %1525 = vrot.lane.b32.xlu0 %v1524, 32
    %v1526 = vpop.permute.xlu0 %1525
    %v1527 = vsel %vm266, %v1526, 0
    %1529 = vmatprep.subr.mxu0 0.0
    %1530 = vmatpush1.msra.mxu0 0.0
    %1531 = vmatprep.subr.mxu0 0.0
    %1532 = vmatpush1.msra.mxu0 0.0
    %1533 = vmatprep.subr.mxu0 0.0
    %1534 = vmatpush1.msra.mxu0 0.0
    %1535 = vmatprep.subr.mxu0 0.0
    %1536 = vmatpush1.msra.mxu0 0.0
    %1537 = vmatprep.subr.mxu0 0.0
    %1538 = vmatpush1.msra.mxu0 0.0
    %1539 = vmatprep.subr.mxu0 0.0
    %1540 = vmatpush1.msra.mxu0 0.0
    %1541 = vmatprep.subr.mxu0 0.0
    %1542 = vmatpush1.msra.mxu0 0.0
    %1543 = vmatprep.subr.mxu0 0.0
    %1544 = vmatpush1.msra.mxu0 0.0
    %1545 = vmatprep.subr.mxu0 0.0
    %1546 = vmatpush1.msra.mxu0 0.0
    %1547 = vmatprep.subr.mxu0 0.0
    %1548 = vmatpush1.msra.mxu0 0.0
    %1549 = vmatprep.subr.mxu0 0.0
    %1550 = vmatpush1.msra.mxu0 0.0
    %1551 = vmatprep.subr.mxu0 0.0
    %1552 = vmatpush1.msra.mxu0 0.0
    %1553 = vmatprep.subr.mxu0 0.0
    %1554 = vmatpush1.msra.mxu0 %v1214
    %1555 = vmatprep.subr.mxu0 0.0
    %1556 = vmatpush1.msra.mxu0 %v1213
    %1557 = vmatprep.subr.mxu0 0.0
    %1558 = vmatpush1.msra.mxu0 %v1212
    %1559 = vmatprep.subr.mxu0 0.0
    %1560 = vmatpush1.msra.mxu0 %v1211
    %1561 = vmatprep.subr.mxu0 0.0
    %1562 = vmatpush2.msra.mxu0 0.0
    %1563 = vmatprep.subr.mxu0 0.0
    %1564 = vmatpush2.msra.mxu0 0.0
    %1565 = vmatprep.subr.mxu0 0.0
    %1566 = vmatpush2.msra.mxu0 0.0
    %1567 = vmatprep.subr.mxu0 0.0
    %1568 = vmatpush2.msra.mxu0 0.0
    %1569 = vmatprep.subr.mxu0 0.0
    %1570 = vmatpush2.msra.mxu0 0.0
    %1571 = vmatprep.subr.mxu0 0.0
    %1572 = vmatpush2.msra.mxu0 0.0
    %1573 = vmatprep.subr.mxu0 0.0
    %1574 = vmatpush2.msra.mxu0 0.0
    %1575 = vmatprep.subr.mxu0 0.0
    %1576 = vmatpush2.msra.mxu0 0.0
    %1577 = vmatprep.subr.mxu0 0.0
    %1578 = vmatpush2.msra.mxu0 0.0
    %1579 = vmatprep.subr.mxu0 0.0
    %1580 = vmatpush2.msra.mxu0 0.0
    %1581 = vmatprep.subr.mxu0 0.0
    %1582 = vmatpush2.msra.mxu0 0.0
    %1583 = vmatprep.subr.mxu0 0.0
    %1584 = vmatpush2.msra.mxu0 0.0
    %1585 = vmatprep.subr.mxu0 0.0
    %1586 = vmatpush2.msra.mxu0 0.0
    %1587 = vmatprep.subr.mxu0 0.0
    %1588 = vmatpush2.msra.mxu0 0.0
    %1589 = vmatprep.subr.mxu0 0.0
    %1590 = vmatpush2.msra.mxu0 0.0
    %1591 = vmatprep.subr.mxu0 0.0
    %1592 = vmatpush2.msra.mxu0 0.0
    %1593 = vmatprep.mubr.f32.mxu0 0.0
    %1594 = vmatmul.mubr.f32.gmra.mxu0 %v1527
    %v1595 = vpop.f32.mrf.mxu0
    %v1596 = vadd.f32 0.0, %v1595
    %v1597 = vpop.f32.mrf.mxu0
    %1598 = vdwg.mxu0
    %v1600 = vrot.slane %v1596, 2
    %v1602 = vadd.f32 %v1203, %v1600
    %v1603 = vxor.u32 %v1602, 2147483648
    %v1604 = vmul.f32 %v1603, 1.442695
    %v1605 = vpow.pop %v1604
    %v1606 = vadd.f32 %v1605, 1.0
    %v1607 = vrcp.pop %v1606
    %v1608 = vmul.f32 1.0, %v1607
    %v1609 = vtanh.pop %v1602
    %v1611 = vrot.slane %v1516, 6
    %v1613 = vmul.f32 %v1608, %v1611
    %1615 = vrot.lane.b32.xlu0 %v1609, 64
    %v1616 = vpop.permute.xlu0 %1615
    %v1618 = vmul.f32 %v1608, %v1616
    %1620 = vrot.lane.b32.xlu0 %v1618, 32
    %v1621 = vpop.permute.xlu0 %1620
    %v1623 = vadd.f32 %v1613, %v1621
    %v1624 = vtanh.pop %v1623
    %1626 = vrot.lane.b32.xlu0 %v1624, 64
    %v1627 = vpop.permute.xlu0 %1626
    %v1629 = vmul.f32 %v1608, %v1627
    %v1631 = vrot.slane %v1629, 6
    %1632 = vrot.lane.b32.xlu0 %v1631, 32
    %v1633 = vpop.permute.xlu0 %1632
    %v1634 = vsel %vm266, %v1633, 0
    %1636 = vmatprep.subr.mxu0 0.0
    %1637 = vmatpush1.msra.mxu0 0.0
    %1638 = vmatprep.subr.mxu0 0.0
    %1639 = vmatpush1.msra.mxu0 0.0
    %1640 = vmatprep.subr.mxu0 0.0
    %1641 = vmatpush1.msra.mxu0 0.0
    %1642 = vmatprep.subr.mxu0 0.0
    %1643 = vmatpush1.msra.mxu0 0.0
    %1644 = vmatprep.subr.mxu0 0.0
    %1645 = vmatpush1.msra.mxu0 0.0
    %1646 = vmatprep.subr.mxu0 0.0
    %1647 = vmatpush1.msra.mxu0 0.0
    %1648 = vmatprep.subr.mxu0 0.0
    %1649 = vmatpush1.msra.mxu0 0.0
    %1650 = vmatprep.subr.mxu0 0.0
    %1651 = vmatpush1.msra.mxu0 0.0
    %1652 = vmatprep.subr.mxu0 0.0
    %1653 = vmatpush1.msra.mxu0 0.0
    %1654 = vmatprep.subr.mxu0 0.0
    %1655 = vmatpush1.msra.mxu0 0.0
    %1656 = vmatprep.subr.mxu0 0.0
    %1657 = vmatpush1.msra.mxu0 0.0
    %1658 = vmatprep.subr.mxu0 0.0
    %1659 = vmatpush1.msra.mxu0 0.0
    %1660 = vmatprep.subr.mxu0 0.0
    %1661 = vmatpush1.msra.mxu0 %v1214
    %1662 = vmatprep.subr.mxu0 0.0
    %1663 = vmatpush1.msra.mxu0 %v1213
    %1664 = vmatprep.subr.mxu0 0.0
    %1665 = vmatpush1.msra.mxu0 %v1212
    %1666 = vmatprep.subr.mxu0 0.0
    %1667 = vmatpush1.msra.mxu0 %v1211
    %1668 = vmatprep.subr.mxu0 0.0
    %1669 = vmatpush2.msra.mxu0 0.0
    %1670 = vmatprep.subr.mxu0 0.0
    %1671 = vmatpush2.msra.mxu0 0.0
    %1672 = vmatprep.subr.mxu0 0.0
    %1673 = vmatpush2.msra.mxu0 0.0
    %1674 = vmatprep.subr.mxu0 0.0
    %1675 = vmatpush2.msra.mxu0 0.0
    %1676 = vmatprep.subr.mxu0 0.0
    %1677 = vmatpush2.msra.mxu0 0.0
    %1678 = vmatprep.subr.mxu0 0.0
    %1679 = vmatpush2.msra.mxu0 0.0
    %1680 = vmatprep.subr.mxu0 0.0
    %1681 = vmatpush2.msra.mxu0 0.0
    %1682 = vmatprep.subr.mxu0 0.0
    %1683 = vmatpush2.msra.mxu0 0.0
    %1684 = vmatprep.subr.mxu0 0.0
    %1685 = vmatpush2.msra.mxu0 0.0
    %1686 = vmatprep.subr.mxu0 0.0
    %1687 = vmatpush2.msra.mxu0 0.0
    %1688 = vmatprep.subr.mxu0 0.0
    %1689 = vmatpush2.msra.mxu0 0.0
    %1690 = vmatprep.subr.mxu0 0.0
    %1691 = vmatpush2.msra.mxu0 0.0
    %1692 = vmatprep.subr.mxu0 0.0
    %1693 = vmatpush2.msra.mxu0 0.0
    %1694 = vmatprep.subr.mxu0 0.0
    %1695 = vmatpush2.msra.mxu0 0.0
    %1696 = vmatprep.subr.mxu0 0.0
    %1697 = vmatpush2.msra.mxu0 0.0
    %1698 = vmatprep.subr.mxu0 0.0
    %1699 = vmatpush2.msra.mxu0 0.0
    %1700 = vmatprep.mubr.f32.mxu0 0.0
    %1701 = vmatmul.mubr.f32.gmra.mxu0 %v1634
    %v1702 = vpop.f32.mrf.mxu0
    %v1703 = vadd.f32 0.0, %v1702
    %v1704 = vpop.f32.mrf.mxu0
    %1705 = vdwg.mxu0
    %v1706 = vadd.f32 %v1208, %v1703
    %v1707 = vxor.u32 %v1706, 2147483648
    %v1708 = vmul.f32 %v1707, 1.442695
    %v1709 = vpow.pop %v1708
    %v1710 = vadd.f32 %v1709, 1.0
    %v1711 = vrcp.pop %v1710
    %v1712 = vmul.f32 1.0, %v1711
    %v1713 = vtanh.pop %v1706
    %v1715 = vrot.slane %v1623, 6
    %v1717 = vmul.f32 %v1712, %v1715
    %1719 = vrot.lane.b32.xlu0 %v1713, 64
    %v1720 = vpop.permute.xlu0 %1719
    %v1722 = vmul.f32 %v1712, %v1720
    %1724 = vrot.lane.b32.xlu0 %v1722, 32
    %v1725 = vpop.permute.xlu0 %1724
    %v1727 = vadd.f32 %v1717, %v1725
    %v1728 = vtanh.pop %v1727
    %1730 = vrot.lane.b32.xlu0 %v1728, 64
    %v1731 = vpop.permute.xlu0 %1730
    %v1733 = vmul.f32 %v1712, %v1731
    %1735 = vrot.lane.b32.xlu0 %v1733, 32
    %v1736 = vpop.permute.xlu0 %1735
    %v1737 = vsel %vm266, %v1736, 0
    %1739 = vmatprep.subr.mxu0 0.0
    %1740 = vmatpush1.msra.mxu0 0.0
    %1741 = vmatprep.subr.mxu0 0.0
    %1742 = vmatpush1.msra.mxu0 0.0
    %1743 = vmatprep.subr.mxu0 0.0
    %1744 = vmatpush1.msra.mxu0 0.0
    %1745 = vmatprep.subr.mxu0 0.0
    %1746 = vmatpush1.msra.mxu0 0.0
    %1747 = vmatprep.subr.mxu0 0.0
    %1748 = vmatpush1.msra.mxu0 0.0
    %1749 = vmatprep.subr.mxu0 0.0
    %1750 = vmatpush1.msra.mxu0 0.0
    %1751 = vmatprep.subr.mxu0 0.0
    %1752 = vmatpush1.msra.mxu0 0.0
    %1753 = vmatprep.subr.mxu0 0.0
    %1754 = vmatpush1.msra.mxu0 0.0
    %1755 = vmatprep.subr.mxu0 0.0
    %1756 = vmatpush1.msra.mxu0 0.0
    %1757 = vmatprep.subr.mxu0 0.0
    %1758 = vmatpush1.msra.mxu0 0.0
    %1759 = vmatprep.subr.mxu0 0.0
    %1760 = vmatpush1.msra.mxu0 0.0
    %1761 = vmatprep.subr.mxu0 0.0
    %1762 = vmatpush1.msra.mxu0 0.0
    %1763 = vmatprep.subr.mxu0 0.0
    %1764 = vmatpush1.msra.mxu0 %v1214
    %1765 = vmatprep.subr.mxu0 0.0
    %1766 = vmatpush1.msra.mxu0 %v1213
    %1767 = vmatprep.subr.mxu0 0.0
    %1768 = vmatpush1.msra.mxu0 %v1212
    %1769 = vmatprep.subr.mxu0 0.0
    %1770 = vmatpush1.msra.mxu0 %v1211
    %1771 = vmatprep.subr.mxu0 0.0
    %1772 = vmatpush2.msra.mxu0 0.0
    %1773 = vmatprep.subr.mxu0 0.0
    %1774 = vmatpush2.msra.mxu0 0.0
    %1775 = vmatprep.subr.mxu0 0.0
    %1776 = vmatpush2.msra.mxu0 0.0
    %1777 = vmatprep.subr.mxu0 0.0
    %1778 = vmatpush2.msra.mxu0 0.0
    %1779 = vmatprep.subr.mxu0 0.0
    %1780 = vmatpush2.msra.mxu0 0.0
    %1781 = vmatprep.subr.mxu0 0.0
    %1782 = vmatpush2.msra.mxu0 0.0
    %1783 = vmatprep.subr.mxu0 0.0
    %1784 = vmatpush2.msra.mxu0 0.0
    %1785 = vmatprep.subr.mxu0 0.0
    %1786 = vmatpush2.msra.mxu0 0.0
    %1787 = vmatprep.subr.mxu0 0.0
    %1788 = vmatpush2.msra.mxu0 0.0
    %1789 = vmatprep.subr.mxu0 0.0
    %1790 = vmatpush2.msra.mxu0 0.0
    %1791 = vmatprep.subr.mxu0 0.0
    %1792 = vmatpush2.msra.mxu0 0.0
    %1793 = vmatprep.subr.mxu0 0.0
    %1794 = vmatpush2.msra.mxu0 0.0
    %1795 = vmatprep.subr.mxu0 0.0
    %1796 = vmatpush2.msra.mxu0 0.0
    %1797 = vmatprep.subr.mxu0 0.0
    %1798 = vmatpush2.msra.mxu0 0.0
    %1799 = vmatprep.subr.mxu0 0.0
    %1800 = vmatpush2.msra.mxu0 0.0
    %1801 = vmatprep.subr.mxu0 0.0
    %1802 = vmatpush2.msra.mxu0 0.0
    %1803 = vmatprep.mubr.f32.mxu0 0.0
    %1804 = vmatmul.mubr.f32.gmra.mxu0 %v1737
    %v1805 = vpop.f32.mrf.mxu0
    %v1806 = vadd.f32 0.0, %v1805
    %v1807 = vpop.f32.mrf.mxu0
    %1808 = vdwg.mxu0
    %v1810 = vrot.slane %v1806, 6
    %v1812 = vadd.f32 %v1208, %v1810
    %v1813 = vxor.u32 %v1812, 2147483648
    %v1814 = vmul.f32 %v1813, 1.442695
    %v1815 = vpow.pop %v1814
    %v1816 = vadd.f32 %v1815, 1.0
    %v1817 = vrcp.pop %v1816
    %v1818 = vmul.f32 1.0, %v1817
    %v1819 = vtanh.pop %v1812
    %v1821 = vrot.slane %v1727, 6
    %v1823 = vmul.f32 %v1818, %v1821
    %1825 = vrot.lane.b32.xlu0 %v1819, 64
    %v1826 = vpop.permute.xlu0 %1825
    %v1828 = vmul.f32 %v1818, %v1826
    %1830 = vrot.lane.b32.xlu0 %v1828, 32
    %v1831 = vpop.permute.xlu0 %1830
    %v1833 = vadd.f32 %v1823, %v1831
    %v1834 = vtanh.pop %v1833
    %1836 = vrot.lane.b32.xlu0 %v1834, 64
    %v1837 = vpop.permute.xlu0 %1836
    %v1839 = vmul.f32 %v1818, %v1837
    %v1841 = vrot.slane %v1839, 2
    %1842 = vrot.lane.b32.xlu0 %v1841, 32
    %v1843 = vpop.permute.xlu0 %1842
    %v1844 = vsel %vm266, %v1843, 0
    %1846 = vmatprep.subr.mxu0 0.0
    %1847 = vmatpush1.msra.mxu0 0.0
    %1848 = vmatprep.subr.mxu0 0.0
    %1849 = vmatpush1.msra.mxu0 0.0
    %1850 = vmatprep.subr.mxu0 0.0
    %1851 = vmatpush1.msra.mxu0 0.0
    %1852 = vmatprep.subr.mxu0 0.0
    %1853 = vmatpush1.msra.mxu0 0.0
    %1854 = vmatprep.subr.mxu0 0.0
    %1855 = vmatpush1.msra.mxu0 0.0
    %1856 = vmatprep.subr.mxu0 0.0
    %1857 = vmatpush1.msra.mxu0 0.0
    %1858 = vmatprep.subr.mxu0 0.0
    %1859 = vmatpush1.msra.mxu0 0.0
    %1860 = vmatprep.subr.mxu0 0.0
    %1861 = vmatpush1.msra.mxu0 0.0
    %1862 = vmatprep.subr.mxu0 0.0
    %1863 = vmatpush1.msra.mxu0 0.0
    %1864 = vmatprep.subr.mxu0 0.0
    %1865 = vmatpush1.msra.mxu0 0.0
    %1866 = vmatprep.subr.mxu0 0.0
    %1867 = vmatpush1.msra.mxu0 0.0
    %1868 = vmatprep.subr.mxu0 0.0
    %1869 = vmatpush1.msra.mxu0 0.0
    %1870 = vmatprep.subr.mxu0 0.0
    %1871 = vmatpush1.msra.mxu0 %v1214
    %1872 = vmatprep.subr.mxu0 0.0
    %1873 = vmatpush1.msra.mxu0 %v1213
    %1874 = vmatprep.subr.mxu0 0.0
    %1875 = vmatpush1.msra.mxu0 %v1212
    %1876 = vmatprep.subr.mxu0 0.0
    %1877 = vmatpush1.msra.mxu0 %v1211
    %1878 = vmatprep.subr.mxu0 0.0
    %1879 = vmatpush2.msra.mxu0 0.0
    %1880 = vmatprep.subr.mxu0 0.0
    %1881 = vmatpush2.msra.mxu0 0.0
    %1882 = vmatprep.subr.mxu0 0.0
    %1883 = vmatpush2.msra.mxu0 0.0
    %1884 = vmatprep.subr.mxu0 0.0
    %1885 = vmatpush2.msra.mxu0 0.0
    %1886 = vmatprep.subr.mxu0 0.0
    %1887 = vmatpush2.msra.mxu0 0.0
    %1888 = vmatprep.subr.mxu0 0.0
    %1889 = vmatpush2.msra.mxu0 0.0
    %1890 = vmatprep.subr.mxu0 0.0
    %1891 = vmatpush2.msra.mxu0 0.0
    %1892 = vmatprep.subr.mxu0 0.0
    %1893 = vmatpush2.msra.mxu0 0.0
    %1894 = vmatprep.subr.mxu0 0.0
    %1895 = vmatpush2.msra.mxu0 0.0
    %1896 = vmatprep.subr.mxu0 0.0
    %1897 = vmatpush2.msra.mxu0 0.0
    %1898 = vmatprep.subr.mxu0 0.0
    %1899 = vmatpush2.msra.mxu0 0.0
    %1900 = vmatprep.subr.mxu0 0.0
    %1901 = vmatpush2.msra.mxu0 0.0
    %1902 = vmatprep.subr.mxu0 0.0
    %1903 = vmatpush2.msra.mxu0 0.0
    %1904 = vmatprep.subr.mxu0 0.0
    %1905 = vmatpush2.msra.mxu0 0.0
    %1906 = vmatprep.subr.mxu0 0.0
    %1907 = vmatpush2.msra.mxu0 0.0
    %1908 = vmatprep.subr.mxu0 0.0
    %1909 = vmatpush2.msra.mxu0 0.0
    %1910 = vmatprep.mubr.f32.mxu0 0.0
    %1911 = vmatmul.mubr.f32.gmra.mxu0 %v1844
    %v1912 = vpop.f32.mrf.mxu0
    %v1913 = vadd.f32 0.0, %v1912
    %v1914 = vpop.f32.mrf.mxu0
    %1915 = vdwg.mxu0
    %v1917 = vrot.slane %v1913, 4
    %v1919 = vadd.f32 %v1208, %v1917
    %v1920 = vxor.u32 %v1919, 2147483648
    %v1921 = vmul.f32 %v1920, 1.442695
    %v1922 = vpow.pop %v1921
    %v1923 = vadd.f32 %v1922, 1.0
    %v1924 = vrcp.pop %v1923
    %v1925 = vmul.f32 1.0, %v1924
    %v1926 = vtanh.pop %v1919
    %v1928 = vrot.slane %v1833, 6
    %v1930 = vmul.f32 %v1925, %v1928
    %1932 = vrot.lane.b32.xlu0 %v1926, 64
    %v1933 = vpop.permute.xlu0 %1932
    %v1935 = vmul.f32 %v1925, %v1933
    %1937 = vrot.lane.b32.xlu0 %v1935, 32
    %v1938 = vpop.permute.xlu0 %1937
    %v1940 = vadd.f32 %v1930, %v1938
    %v1941 = vtanh.pop %v1940
    %1943 = vrot.lane.b32.xlu0 %v1941, 64
    %v1944 = vpop.permute.xlu0 %1943
    %v1946 = vmul.f32 %v1925, %v1944
    %v1948 = vrot.slane %v1946, 4
    %1949 = vrot.lane.b32.xlu0 %v1948, 32
    %v1950 = vpop.permute.xlu0 %1949
    %v1951 = vsel %vm266, %v1950, 0
    %1953 = vmatprep.subr.mxu0 0.0
    %1954 = vmatpush1.msra.mxu0 0.0
    %1955 = vmatprep.subr.mxu0 0.0
    %1956 = vmatpush1.msra.mxu0 0.0
    %1957 = vmatprep.subr.mxu0 0.0
    %1958 = vmatpush1.msra.mxu0 0.0
    %1959 = vmatprep.subr.mxu0 0.0
    %1960 = vmatpush1.msra.mxu0 0.0
    %1961 = vmatprep.subr.mxu0 0.0
    %1962 = vmatpush1.msra.mxu0 0.0
    %1963 = vmatprep.subr.mxu0 0.0
    %1964 = vmatpush1.msra.mxu0 0.0
    %1965 = vmatprep.subr.mxu0 0.0
    %1966 = vmatpush1.msra.mxu0 0.0
    %1967 = vmatprep.subr.mxu0 0.0
    %1968 = vmatpush1.msra.mxu0 0.0
    %1969 = vmatprep.subr.mxu0 0.0
    %1970 = vmatpush1.msra.mxu0 0.0
    %1971 = vmatprep.subr.mxu0 0.0
    %1972 = vmatpush1.msra.mxu0 0.0
    %1973 = vmatprep.subr.mxu0 0.0
    %1974 = vmatpush1.msra.mxu0 0.0
    %1975 = vmatprep.subr.mxu0 0.0
    %1976 = vmatpush1.msra.mxu0 0.0
    %1977 = vmatprep.subr.mxu0 0.0
    %1978 = vmatpush1.msra.mxu0 %v1214
    %1979 = vmatprep.subr.mxu0 0.0
    %1980 = vmatpush1.msra.mxu0 %v1213
    %1981 = vmatprep.subr.mxu0 0.0
    %1982 = vmatpush1.msra.mxu0 %v1212
    %1983 = vmatprep.subr.mxu0 0.0
    %1984 = vmatpush1.msra.mxu0 %v1211
    %1985 = vmatprep.subr.mxu0 0.0
    %1986 = vmatpush2.msra.mxu0 0.0
    %1987 = vmatprep.subr.mxu0 0.0
    %1988 = vmatpush2.msra.mxu0 0.0
    %1989 = vmatprep.subr.mxu0 0.0
    %1990 = vmatpush2.msra.mxu0 0.0
    %1991 = vmatprep.subr.mxu0 0.0
    %1992 = vmatpush2.msra.mxu0 0.0
    %1993 = vmatprep.subr.mxu0 0.0
    %1994 = vmatpush2.msra.mxu0 0.0
    %1995 = vmatprep.subr.mxu0 0.0
    %1996 = vmatpush2.msra.mxu0 0.0
    %1997 = vmatprep.subr.mxu0 0.0
    %1998 = vmatpush2.msra.mxu0 0.0
    %1999 = vmatprep.subr.mxu0 0.0
    %2000 = vmatpush2.msra.mxu0 0.0
    %2001 = vmatprep.subr.mxu0 0.0
    %2002 = vmatpush2.msra.mxu0 0.0
    %2003 = vmatprep.subr.mxu0 0.0
    %2004 = vmatpush2.msra.mxu0 0.0
    %2005 = vmatprep.subr.mxu0 0.0
    %2006 = vmatpush2.msra.mxu0 0.0
    %2007 = vmatprep.subr.mxu0 0.0
    %2008 = vmatpush2.msra.mxu0 0.0
    %2009 = vmatprep.subr.mxu0 0.0
    %2010 = vmatpush2.msra.mxu0 0.0
    %2011 = vmatprep.subr.mxu0 0.0
    %2012 = vmatpush2.msra.mxu0 0.0
    %2013 = vmatprep.subr.mxu0 0.0
    %2014 = vmatpush2.msra.mxu0 0.0
    %2015 = vmatprep.subr.mxu0 0.0
    %2016 = vmatpush2.msra.mxu0 0.0
    %2017 = vmatprep.mubr.f32.mxu0 0.0
    %2018 = vmatmul.mubr.f32.gmra.mxu0 %v1951
    %v2019 = vpop.f32.mrf.mxu0
    %v2020 = vadd.f32 0.0, %v2019
    %v2021 = vpop.f32.mrf.mxu0
    %2022 = vdwg.mxu0
    %v2024 = vrot.slane %v2020, 2
    %v2026 = vadd.f32 %v1208, %v2024
    %v2027 = vxor.u32 %v2026, 2147483648
    %v2028 = vmul.f32 %v2027, 1.442695
    %v2029 = vpow.pop %v2028
    %v2030 = vadd.f32 %v2029, 1.0
    %v2031 = vrcp.pop %v2030
    %v2032 = vmul.f32 1.0, %v2031
    %v2033 = vtanh.pop %v2026
    %v2035 = vrot.slane %v1940, 6
    %v2037 = vmul.f32 %v2032, %v2035
    %2039 = vrot.lane.b32.xlu0 %v2033, 64
    %v2040 = vpop.permute.xlu0 %2039
    %v2042 = vmul.f32 %v2032, %v2040
    %2044 = vrot.lane.b32.xlu0 %v2042, 32
    %v2045 = vpop.permute.xlu0 %2044
    %v2047 = vadd.f32 %v2037, %v2045
    %v2048 = vtanh.pop %v2047
    %2050 = vrot.lane.b32.xlu0 %v2048, 64
    %v2051 = vpop.permute.xlu0 %2050
    %v2053 = vmul.f32 %v2032, %v2051
    %v2055 = vunpack.c.l.s4 1966171168
    %v2056 = vunpack.c.0.s8 %v2055
    %v2057 = vlaneseq
    %v2058 = vshrl.u32 %v2057, 7
    %v2059 = vsub.s32 %v2056, %v2058
    %v2060 = vrot.slane %v1309, %v2059
    %v2061 = vcombine.high %v2060, %v2060
    %v2063 = vunpack.c.l.s4 1966171168
    %v2064 = vunpack.c.0.s8 %v2063
    %v2065 = vlaneseq
    %v2066 = vshrl.u32 %v2065, 7
    %v2067 = vsub.s32 %v2064, %v2066
    %v2068 = vrot.slane %v2060, %v2067
    %v2070 = vunpack.c.l.s4 1966171168
    %v2071 = vunpack.c.0.s8 %v2070
    %v2072 = vlaneseq
    %v2073 = vshrl.u32 %v2072, 7
    %v2074 = vsub.s32 %v2071, %v2073
    %v2075 = vrot.slane %v2061, %v2074
    %v2079 = vunpack.c.l.s4 1966171168
    %v2080 = vunpack.c.0.s8 %v2079
    %v2081 = vlaneseq
    %v2082 = vshrl.u32 %v2081, 7
    %v2083 = vsub.s32 %v2080, %v2082
    %v2084 = vrot.slane %v1415, %v2083
    %v2085 = vcombine.high %v2084, %v2084
    %v2087 = vunpack.c.l.s4 1966171168
    %v2088 = vunpack.c.0.s8 %v2087
    %v2089 = vlaneseq
    %v2090 = vshrl.u32 %v2089, 7
    %v2091 = vsub.s32 %v2088, %v2090
    %v2092 = vrot.slane %v2084, %v2091
    %v2094 = vunpack.c.l.s4 1966171168
    %v2095 = vunpack.c.0.s8 %v2094
    %v2096 = vlaneseq
    %v2097 = vshrl.u32 %v2096, 7
    %v2098 = vsub.s32 %v2095, %v2097
    %v2099 = vrot.slane %v2085, %v2098
    %v2100 = vcombine.high %v2092, %v2092
    %v2101 = vcombine.high %v2099, %v2099
    %v2102 = vcombine.high %v1522, %v1522
    %v2104 = vunpack.c.l.s4 1966171168
    %v2105 = vunpack.c.0.s8 %v2104
    %v2106 = vlaneseq
    %v2107 = vshrl.u32 %v2106, 7
    %v2108 = vsub.s32 %v2105, %v2107
    %v2109 = vrot.slane %v2102, %v2108
    %v2110 = vcombine.high %v2109, %v2109
    %v2112 = vunpack.c.l.s4 1966171168
    %v2113 = vunpack.c.0.s8 %v2112
    %v2114 = vlaneseq
    %v2115 = vshrl.u32 %v2114, 7
    %v2116 = vsub.s32 %v2113, %v2115
    %v2117 = vrot.slane %v2109, %v2116
    %v2119 = vunpack.c.l.s4 1966171168
    %v2120 = vunpack.c.0.s8 %v2119
    %v2121 = vlaneseq
    %v2122 = vshrl.u32 %v2121, 7
    %v2123 = vsub.s32 %v2120, %v2122
    %v2124 = vrot.slane %v2110, %v2123
    %v2125 = vcombine.high %v1629, %v1629
    %v2127 = vunpack.c.l.s4 1966171168
    %v2128 = vunpack.c.0.s8 %v2127
    %v2129 = vlaneseq
    %v2130 = vshrl.u32 %v2129, 7
    %v2131 = vsub.s32 %v2128, %v2130
    %v2132 = vrot.slane %v2125, %v2131
    %v2133 = vcombine.high %v2132, %v2132
    %v2135 = vunpack.c.l.s4 1966171168
    %v2136 = vunpack.c.0.s8 %v2135
    %v2137 = vlaneseq
    %v2138 = vshrl.u32 %v2137, 7
    %v2139 = vsub.s32 %v2136, %v2138
    %v2140 = vrot.slane %v2132, %v2139
    %v2142 = vunpack.c.l.s4 1966171168
    %v2143 = vunpack.c.0.s8 %v2142
    %v2144 = vlaneseq
    %v2145 = vshrl.u32 %v2144, 7
    %v2146 = vsub.s32 %v2143, %v2145
    %v2147 = vrot.slane %v2133, %v2146
    %v2148 = vcombine.high %v2140, %v2140
    %v2149 = vcombine.high %v2147, %v2147
    %v2151 = vunpack.c.l.s4 1966171168
    %v2152 = vunpack.c.0.s8 %v2151
    %v2153 = vlaneseq
    %v2154 = vshrl.u32 %v2153, 7
    %v2155 = vsub.s32 %v2152, %v2154
    %v2156 = vrot.slane %v1733, %v2155
    %v2157 = vcombine.high %v2156, %v2156
    %v2159 = vunpack.c.l.s4 1966171168
    %v2160 = vunpack.c.0.s8 %v2159
    %v2161 = vlaneseq
    %v2162 = vshrl.u32 %v2161, 7
    %v2163 = vsub.s32 %v2160, %v2162
    %v2164 = vrot.slane %v2156, %v2163
    %v2166 = vunpack.c.l.s4 1966171168
    %v2167 = vunpack.c.0.s8 %v2166
    %v2168 = vlaneseq
    %v2169 = vshrl.u32 %v2168, 7
    %v2170 = vsub.s32 %v2167, %v2169
    %v2171 = vrot.slane %v2157, %v2170
    %v2173 = vunpack.c.l.s4 1966171168
    %v2174 = vunpack.c.0.s8 %v2173
    %v2175 = vlaneseq
    %v2176 = vshrl.u32 %v2175, 7
    %v2177 = vsub.s32 %v2174, %v2176
    %v2178 = vrot.slane %v1839, %v2177
    %v2179 = vcombine.high %v2178, %v2178
    %v2181 = vunpack.c.l.s4 1966171168
    %v2182 = vunpack.c.0.s8 %v2181
    %v2183 = vlaneseq
    %v2184 = vshrl.u32 %v2183, 7
    %v2185 = vsub.s32 %v2182, %v2184
    %v2186 = vrot.slane %v2178, %v2185
    %v2188 = vunpack.c.l.s4 1966171168
    %v2189 = vunpack.c.0.s8 %v2188
    %v2190 = vlaneseq
    %v2191 = vshrl.u32 %v2190, 7
    %v2192 = vsub.s32 %v2189, %v2191
    %v2193 = vrot.slane %v2179, %v2192
    %v2194 = vcombine.high %v2186, %v2186
    %v2195 = vcombine.high %v2193, %v2193
    %v2196 = vcombine.high %v1946, %v1946
    %v2198 = vunpack.c.l.s4 1966171168
    %v2199 = vunpack.c.0.s8 %v2198
    %v2200 = vlaneseq
    %v2201 = vshrl.u32 %v2200, 7
    %v2202 = vsub.s32 %v2199, %v2201
    %v2203 = vrot.slane %v2196, %v2202
    %v2204 = vcombine.high %v2203, %v2203
    %v2206 = vunpack.c.l.s4 1966171168
    %v2207 = vunpack.c.0.s8 %v2206
    %v2208 = vlaneseq
    %v2209 = vshrl.u32 %v2208, 7
    %v2210 = vsub.s32 %v2207, %v2209
    %v2211 = vrot.slane %v2203, %v2210
    %v2213 = vunpack.c.l.s4 1966171168
    %v2214 = vunpack.c.0.s8 %v2213
    %v2215 = vlaneseq
    %v2216 = vshrl.u32 %v2215, 7
    %v2217 = vsub.s32 %v2214, %v2216
    %v2218 = vrot.slane %v2204, %v2217
    %v2220 = vcombine.high %v2053, %v2053
    %v2222 = vunpack.c.l.s4 1966171168
    %v2223 = vunpack.c.0.s8 %v2222
    %v2224 = vlaneseq
    %v2225 = vshrl.u32 %v2224, 7
    %v2226 = vsub.s32 %v2223, %v2225
    %v2227 = vrot.slane %v2220, %v2226
    %v2228 = vcombine.high %v2227, %v2227
    %v2230 = vunpack.c.l.s4 1966171168
    %v2231 = vunpack.c.0.s8 %v2230
    %v2232 = vlaneseq
    %v2233 = vshrl.u32 %v2232, 7
    %v2234 = vsub.s32 %v2231, %v2233
    %v2235 = vrot.slane %v2227, %v2234
    %v2237 = vunpack.c.l.s4 1966171168
    %v2238 = vunpack.c.0.s8 %v2237
    %v2239 = vlaneseq
    %v2240 = vshrl.u32 %v2239, 7
    %v2241 = vsub.s32 %v2238, %v2240
    %v2242 = vrot.slane %v2228, %v2241
    %v2243 = vcombine.high %v2235, %v2235
    %v2244 = vcombine.high %v2242, %v2242
    %v2245 = vlaneseq
    %v2246 = vshrl.u32 %v2245, 7
    %v2247 = vsub.s32 0, %v2246
    %v2248 = vrot.slane %v2100, %v2247
    %v2249 = vlaneseq
    %v2250 = vshrl.u32 %v2249, 7
    %v2251 = vsub.s32 0, %v2250
    %v2252 = vrot.slane %v2101, %v2251
    %v2255 = vlaneseq
    %v2256 = vshrl.u32 %v2255, 7
    %v2257 = vsub.s32 0, %v2256
    %v2258 = vrot.slane %v2117, %v2257
    %v2259 = vlaneseq
    %v2260 = vshrl.u32 %v2259, 7
    %v2261 = vsub.s32 0, %v2260
    %v2262 = vrot.slane %v2124, %v2261
    %v2265 = vlaneseq
    %v2266 = vshrl.u32 %v2265, 7
    %v2267 = vsub.s32 0, %v2266
    %v2268 = vrot.slane %v2148, %v2267
    %v2269 = vlaneseq
    %v2270 = vshrl.u32 %v2269, 7
    %v2271 = vsub.s32 0, %v2270
    %v2272 = vrot.slane %v2149, %v2271
    %v2275 = vlaneseq
    %v2276 = vshrl.u32 %v2275, 7
    %v2277 = vsub.s32 0, %v2276
    %v2278 = vrot.slane %v2164, %v2277
    %v2279 = vlaneseq
    %v2280 = vshrl.u32 %v2279, 7
    %v2281 = vsub.s32 0, %v2280
    %v2282 = vrot.slane %v2171, %v2281
    %v2285 = vlaneseq
    %v2286 = vshrl.u32 %v2285, 7
    %v2287 = vsub.s32 0, %v2286
    %v2288 = vrot.slane %v2194, %v2287
    %v2289 = vlaneseq
    %v2290 = vshrl.u32 %v2289, 7
    %v2291 = vsub.s32 0, %v2290
    %v2292 = vrot.slane %v2195, %v2291
    %v2295 = vlaneseq
    %v2296 = vshrl.u32 %v2295, 7
    %v2297 = vsub.s32 0, %v2296
    %v2298 = vrot.slane %v2211, %v2297
    %v2299 = vlaneseq
    %v2300 = vshrl.u32 %v2299, 7
    %v2301 = vsub.s32 0, %v2300
    %v2302 = vrot.slane %v2218, %v2301
    %v2305 = vlaneseq
    %v2306 = vshrl.u32 %v2305, 7
    %v2307 = vsub.s32 0, %v2306
    %v2308 = vrot.slane %v2243, %v2307
    %v2309 = vlaneseq
    %v2310 = vshrl.u32 %v2309, 7
    %v2311 = vsub.s32 0, %v2310
    %v2312 = vrot.slane %v2244, %v2311
    %vm2315 = vcmask 1040384
    %v2316 = vsel %vm2315, %v2068, %v2248
    %v2317 = vsel %vm2315, %v2075, %v2252
    %v2318 = vsel %vm162, %v2316, %v2258
    %v2319 = vsel %vm162, %v2317, %v2262
    %vm2320 = vcmask 1042432
    %v2321 = vsel %vm2320, %v2318, %v2268
    %v2322 = vsel %vm2320, %v2319, %v2272
    %v2323 = vsel %vm164, %v2321, %v2278
    %v2324 = vsel %vm164, %v2322, %v2282
    %vm2325 = vcmask 1044480
    %v2326 = vsel %vm2325, %v2323, %v2288
    %v2327 = vsel %vm2325, %v2324, %v2292
    %v2328 = vsel %vm166, %v2326, %v2298
    %v2329 = vsel %vm166, %v2327, %v2302
    %vm2330 = vcmask 1046528
    %v2331 = vsel %vm2330, %v2328, %v2308
    %v2332 = vsel %vm2330, %v2329, %v2312
    %v2333 = vld [vmem:[%s7] sm:$0x1]
    %v2334 = vld [vmem:[#allocation12] sm:$0x1]
    %2337 = vrot.lane.b32.xlu0 %v2331, 32
    %v2338 = vpop.permute.xlu0 %2337
    %2339 = vrot.lane.b32.xlu0 %v2332, 32
    %v2340 = vpop.permute.xlu0 %2339
    %v2343 = vsel %vm266, %v2338, 0.0
    %2344 = vadd.xlane.f32.xlu0 %v2343
    %v2345 = vpop.xlane.xlu0 %2344
    %v2346 = vsel %vm266, %v2340, 0.0
    %2347 = vadd.xlane.f32.xlu0 %v2346
    %v2348 = vpop.xlane.xlu0 %2347
    %v2349 = vrcp.pop 32.0
    %v2350 = vmul.f32 %v2345, %v2349
    %v2351 = vmul.f32 %v2348, %v2349
    %v2352 = vsub.f32 %v2331, %v2350
    %v2353 = vsub.f32 %v2332, %v2351
    %v2354 = vmul.f32 %v2352, %v2352
    %v2355 = vmul.f32 %v2353, %v2353
    %2358 = vrot.lane.b32.xlu0 %v2354, 32
    %v2359 = vpop.permute.xlu0 %2358
    %2360 = vrot.lane.b32.xlu0 %v2355, 32
    %v2361 = vpop.permute.xlu0 %2360
    %v2364 = vsel %vm266, %v2359, 0.0
    %2365 = vadd.xlane.f32.xlu0 %v2364
    %v2366 = vpop.xlane.xlu0 %2365
    %v2367 = vsel %vm266, %v2361, 0.0
    %2368 = vadd.xlane.f32.xlu0 %v2367
    %v2369 = vpop.xlane.xlu0 %2368
    %v2370 = vmul.f32 %v2366, %v2349
    %v2371 = vmul.f32 %v2369, %v2349
    %v2372 = vadd.f32 %v2370, 1e-05
    %v2373 = vadd.f32 %v2371, 1e-05
    %v2374 = vrsqrt.pop %v2372
    %v2375 = vrsqrt.pop %v2373
    %v2376 = vmul.f32 %v2352, %v2374
    %v2377 = vmul.f32 %v2353, %v2375
    %v2379 = vlaneseq
    %v2380 = vshrl.u32 %v2379, 7
    %v2381 = vsub.s32 0, %v2380
    %v2382 = vrot.slane %v2333, %v2381
    %2383 = vrot.lane.b32.xlu0 %v2382, 96
    %v2384 = vpop.permute.xlu0 %2383
    %v2386 = vmul.f32 %v2376, %v2384
    %v2387 = vmul.f32 %v2377, %v2384
    %v2389 = vlaneseq
    %v2390 = vshrl.u32 %v2389, 7
    %v2391 = vsub.s32 0, %v2390
    %v2392 = vrot.slane %v2334, %v2391
    %2393 = vrot.lane.b32.xlu0 %v2392, 96
    %v2394 = vpop.permute.xlu0 %2393
    %v2396 = vadd.f32 %v2386, %v2394
    %v2397 = vadd.f32 %v2387, %v2394
    %2400 = vrot.lane.b32.xlu0 %v2396, 32
    %v2401 = vpop.permute.xlu0 %2400
    %2402 = vrot.lane.b32.xlu0 %v2397, 32
    %v2403 = vpop.permute.xlu0 %2402
    %2406 = vst.msk [vmem:[#allocation15] sm:$0xff] %vm266, %v2401
    %2407 = vst.msk [vmem:[#allocation15 + $0x8] sm:$0xff] %vm266, %v2403
    %v2408 = vld [vmem:[%s9] sm:$0x1]
    %v2410 = vlaneseq
    %v2411 = vshrl.u32 %v2410, 7
    %v2412 = vsub.s32 0, %v2411
    %v2413 = vrot.slane %v2408, %v2412
    %2414 = vrot.lane.b32.xlu0 %v2413, 96
    %v2415 = vpop.permute.xlu0 %2414
    %v2417 = vmul.f32 %v2396, %v2415
    %v2418 = vmul.f32 %v2397, %v2415
    %2421 = vrot.lane.b32.xlu0 %v2417, 32
    %v2422 = vpop.permute.xlu0 %2421
    %2423 = vrot.lane.b32.xlu0 %v2418, 32
    %v2424 = vpop.permute.xlu0 %2423
    %v2427 = vsel %vm266, %v2422, 0.0
    %2428 = vadd.xlane.f32.xlu0 %v2427
    %v2429 = vpop.xlane.xlu0 %2428
    %v2430 = vsel %vm266, %v2424, 0.0
    %2431 = vadd.xlane.f32.xlu0 %v2430
    %v2432 = vpop.xlane.xlu0 %2431
    %v2433 = vld [vmem:[#allocation2] sm:$0x1]
    %v2435 = vlaneseq
    %v2436 = vshrl.u32 %v2435, 7
    %v2437 = vsub.s32 0, %v2436
    %v2438 = vrot.slane %v2433, %v2437
    %2439 = vset.pattern.permute.xlu0 0
    %2440 = vperm.xlu0 %2439, %v2438
    %v2441 = vpop.permute.xlu0 %2440
    %v2443 = vadd.f32 %v2429, %v2441
    %v2444 = vadd.f32 %v2432, %v2441
    %v2445 = vxor.u32 %v2443, 2147483648
    %v2446 = vxor.u32 %v2444, 2147483648
    %v2447 = vmul.f32 %v2445, 1.442695
    %v2448 = vpow.pop %v2447
    %v2449 = vmul.f32 %v2446, 1.442695
    %v2450 = vpow.pop %v2449
    %v2451 = vadd.f32 %v2448, 1.0
    %v2452 = vadd.f32 %v2450, 1.0
    %v2453 = vrcp.pop %v2451
    %v2454 = vmul.f32 1.0, %v2453
    %v2455 = vrcp.pop %v2452
    %v2456 = vmul.f32 1.0, %v2455
    %v2459 = vlaneseq
    %v2460 = vand.u32 %v2459, 127
    %v2461 = vlaneseq
    %v2462 = vshrl.u32 %v2461, 7
    %v2463 = vsub.s32 %v2460, %v2462
    %v2464 = vrot.slane %v2454, %v2463
    %v2465 = vlaneseq
    %v2466 = vshrl.u32 %v2465, 7
    %v2467 = vsub.s32 %v2460, %v2466
    %v2468 = vrot.slane %v2456, %v2467
    %v2469 = vsel %vm129, %v2468, %v2464
    %vm2471 = vcmask 58368
    %2472 = vst.msk [vmem:[#allocation14] sm:$0x3] %vm2471, %v2469
    // Predicated region
    $region70: #{rnn_classifier_forward.1} parent=1 // pred_check
      _
    $region71: #{rnn_classifier_forward.1} parent=1 // pred_check_branch
      %2474 = sbr.rel (0) target = $region73
    $region72: #{rnn_classifier_forward.1} parent=1 // pred_region
      %s2476 = ssub.s32 32, 32
      %2477 = vsyncadd [#allocation5], %s2476
      %s2479 = sshll.u32 [#allocation14], 4
      %s2480 = int_to_ptr.vmem [resolvable:$true] %s2479
      %2482 = dma.vmem_to_hbm [thread:$0]  %s2480, 32, %s11, [#allocation5]
    $region73: #{rnn_classifier_forward.1} parent=1 // pred_fallthru
      _
    // Predicated region
    $region74: #{rnn_classifier_forward.1} parent=1 // pred_check
      _
    $region75: #{rnn_classifier_forward.1} parent=1 // pred_check_branch
      %2484 = sbr.rel (0) target = $region77
    $region76: #{rnn_classifier_forward.1} parent=1 // pred_region
      %s2486 = ssub.s32 256, 256
      %2487 = vsyncadd [#allocation16], %s2486
      %s2488 = sshll.u32 [#allocation15], 4
      %s2489 = int_to_ptr.vmem [resolvable:$true] %s2488
      %2494 = dma.vmem_to_hbm [thread:$0]  %s2489, 256, %s12, [#allocation16], 128, 128, 8
    $region77: #{rnn_classifier_forward.1} parent=1 // pred_fallthru
      _
    // Predicated region
    $region78: #{rnn_classifier_forward.1} parent=1 // pred_check
      _
    $region79: #{rnn_classifier_forward.1} parent=1 // pred_check_branch
      %2496 = sbr.rel (0) target = $region81
    $region80: #{rnn_classifier_forward.1} parent=1 // pred_region
      %2497 = dma.done [#allocation5], 32
    $region81: #{rnn_classifier_forward.1} parent=1 // pred_fallthru
      _
    // Predicated region
    $region82: #{rnn_classifier_forward.1} parent=1 // pred_check
      _
    $region83: #{rnn_classifier_forward.1} parent=1 // pred_check_branch
      %2499 = sbr.rel (0) target = $region85
    $region84: #{rnn_classifier_forward.1} parent=1 // pred_region
      %2500 = dma.done [#allocation16], 256
    $region85: #{rnn_classifier_forward.1} parent=1 // pred_fallthru
      _
    %2501 = vsyncpa [#allocation4], 1
    %2502 = vsyncpa [#allocation7], 1
    %2503 = vsyncpa [#allocation10], 1
    %2504 = vsyncpa [#allocation13], 1
    %2505 = vsyncpa [#allocation5], 1
    %2506 = vsyncpa [#allocation16], 1

</llo_original>
